<compile_context>
chip_gen: v5e
topology: v5e:2x2
jax: 0.10.0
libtpu: 0.0.40
codegen_flags: <defaults>
</compile_context>

<pallas_src>
import jax
import jax.numpy as jnp
from jax.experimental import pallas as pl
from jax.experimental.pallas import tpu as pltpu


LANE = 128


def _round_up(n, m):
    return ((n + m - 1) // m) * m


# ----------------------------------------------------------------------------
# Token shift (plain-JAX glue).
# TODO(synk): `bi_T_token_shift` is resolved via eval() in the original file
# and its source is not in the provided snippet; this implements the standard
# bidirectional token shift along T: the first gamma*C channels shifted forward
# by shift_pixel, the next gamma*C shifted backward, remaining channels passed
# through unchanged.
# ----------------------------------------------------------------------------
def bi_T_token_shift(x, shift_pixel, channel_gamma, patch_resolution):
    del patch_resolution  # shift is along the flattened token axis T
    B, T, C = x.shape
    g = int(C * channel_gamma)
    s = shift_pixel
    zeros = jnp.zeros((B, s, g), x.dtype)
    fwd = jnp.concatenate([zeros, x[:, :T - s, :g]], axis=1)        # +s along T
    bwd = jnp.concatenate([x[:, s:, g:2 * g], zeros], axis=1)       # -s along T
    return jnp.concatenate([fwd, bwd, x[:, :, 2 * g:]], axis=-1)


# ----------------------------------------------------------------------------
# Pallas kernel: mix + key/receptance/value matmuls + relu^2 + sigmoid gate.
# Refs (Cp / Hp are the 128-padded channel / hidden sizes):
#   x_ref   : (tm, Cp)  current-token rows (f32)
#   xx_ref  : (tm, Cp)  shifted-token rows (f32)
#   mk_ref  : (1, Cp)   spatial_mix_k (f32)
#   mr_ref  : (1, Cp)   spatial_mix_r (f32)
#   wk_ref  : (Cp, Hp)  key weight, transposed, bf16
#   wr_ref  : (Cp, Cp)  receptance weight, transposed, bf16
#   wv_ref  : (Hp, Cp)  value weight, transposed, bf16
#   o_ref   : (tm, Cp)  output rows
# ----------------------------------------------------------------------------
def channel_mix_kernel(x_ref, xx_ref, mk_ref, mr_ref, wk_ref, wr_ref, wv_ref,
                       o_ref):
    x = x_ref[...].astype(jnp.float32)
    xx = xx_ref[...].astype(jnp.float32)
    mk = mk_ref[...]   # (1, Cp), broadcasts over rows (f32)
    mr = mr_ref[...]

    # token mix in f32 on the VPU
    xk = x * mk + xx * (1.0 - mk)
    xr = x * mr + xx * (1.0 - mr)

    # k = square(relu(xk @ Wk))   -- MXU in bf16, f32 accumulate
    k = jnp.dot(xk.astype(jnp.bfloat16), wk_ref[...],
                preferred_element_type=jnp.float32)
    k = jnp.square(jnp.maximum(k, 0.0))

    # kv = k @ Wv
    kv = jnp.dot(k.astype(jnp.bfloat16), wv_ref[...],
                 preferred_element_type=jnp.float32)

    # rkv = sigmoid(xr @ Wr) * kv   (sigmoid/gate in f32)
    r = jax.nn.sigmoid(
        jnp.dot(xr.astype(jnp.bfloat16), wr_ref[...],
                preferred_element_type=jnp.float32))

    o_ref[...] = (r * kv).astype(o_ref.dtype)


# ----------------------------------------------------------------------------
# One-time parameter preparation: transpose to (in, out), cast matmul weights
# to bf16, zero-pad C and H up to multiples of 128 lanes.  Call once; reuse the
# result for every forward call.
# ----------------------------------------------------------------------------
def prepare_params(params, compute_dtype=jnp.bfloat16):
    wk = params["key_w"]          # (H, C)  torch Linear layout (out, in)
    wr = params["receptance_w"]   # (C, C)
    wv = params["value_w"]        # (C, H)
    H, C = wk.shape
    Cp = _round_up(C, LANE)
    Hp = _round_up(H, LANE)

    wk_t = jnp.zeros((Cp, Hp), compute_dtype).at[:C, :H].set(
        wk.T.astype(compute_dtype))
    wr_t = jnp.zeros((Cp, Cp), compute_dtype).at[:C, :C].set(
        wr.T.astype(compute_dtype))
    wv_t = jnp.zeros((Hp, Cp), compute_dtype).at[:H, :C].set(
        wv.T.astype(compute_dtype))
    mk = jnp.zeros((1, Cp), jnp.float32).at[0, :C].set(
        params["spatial_mix_k"].reshape(-1).astype(jnp.float32))
    mr = jnp.zeros((1, Cp), jnp.float32).at[0, :C].set(
        params["spatial_mix_r"].reshape(-1).astype(jnp.float32))

    return {"wk_t": wk_t, "wr_t": wr_t, "wv_t": wv_t,
            "mk": mk, "mr": mr, "C": C, "Cp": Cp, "H": H, "Hp": Hp}


# ----------------------------------------------------------------------------
# Wrapper
# ----------------------------------------------------------------------------
def vrwkv_channel_mix(x, prepared, patch_resolution, *, shift_pixel=1,
                      channel_gamma=0.25, tm=256):
    """x: (B, T, C) float32.  `prepared` from prepare_params().  -> (B, T, C)."""
    B, T, C = x.shape
    assert C == prepared["C"]
    Cp, Hp = prepared["Cp"], prepared["Hp"]

    if shift_pixel > 0:
        xx = bi_T_token_shift(x, shift_pixel, channel_gamma, patch_resolution)
    else:
        xx = x  # kernel mix then reduces to xk = xr = x

    n_rows = B * T
    n_rows_p = _round_up(n_rows, tm)
    pad_r = n_rows_p - n_rows
    pad_c = Cp - C

    xf = x.reshape(n_rows, C)
    xxf = xx.reshape(n_rows, C)
    if pad_r or pad_c:
        xf = jnp.pad(xf, ((0, pad_r), (0, pad_c)))
        xxf = jnp.pad(xxf, ((0, pad_r), (0, pad_c)))

    grid = (n_rows_p // tm,)
    row_spec = pl.BlockSpec((tm, Cp), lambda i: (i, 0))
    full = lambda shape: pl.BlockSpec(shape, lambda i: (0, 0))

    out = pl.pallas_call(
        channel_mix_kernel,
        out_shape=jax.ShapeDtypeStruct((n_rows_p, Cp), x.dtype),
        grid=grid,
        in_specs=[
            row_spec,            # x rows
            row_spec,            # shifted rows
            full((1, Cp)),       # spatial_mix_k
            full((1, Cp)),       # spatial_mix_r
            full((Cp, Hp)),      # key weight (transposed, bf16)
            full((Cp, Cp)),      # receptance weight (transposed, bf16)
            full((Hp, Cp)),      # value weight (transposed, bf16)
        ],
        out_specs=row_spec,
        compiler_params=pltpu.CompilerParams(
            dimension_semantics=("parallel",),
            vmem_limit_bytes=64 * 1024 * 1024,
        ),
    )(xf, xxf, prepared["mk"], prepared["mr"],
      prepared["wk_t"], prepared["wr_t"], prepared["wv_t"])

    return out[:n_rows, :C].reshape(B, T, C)


# ----------------------------------------------------------------------------
# Deterministic parameter construction (mirrors VRWKV_ChannelMix.__init__,
# init_mode='fancy', key_norm=False, no bias).
# ----------------------------------------------------------------------------
def init_params(key, n_embd, n_layer, layer_id, hidden_rate=4):
    hidden = hidden_rate * n_embd
    ratio_1_to_almost0 = 1.0 - layer_id / n_layer
    idx = jnp.arange(n_embd, dtype=jnp.float32) / n_embd
    mix = jnp.power(idx, ratio_1_to_almost0).reshape(1, 1, n_embd)

    k1, k2, k3 = jax.random.split(key, 3)
    # Linear weights in torch layout (out_features, in_features), no bias.
    key_w = 0.02 * jax.random.normal(k1, (hidden, n_embd), jnp.float32)
    receptance_w = 0.02 * jax.random.normal(k2, (n_embd, n_embd), jnp.float32)
    value_w = 0.02 * jax.random.normal(k3, (n_embd, hidden), jnp.float32)

    return {
        "spatial_mix_k": mix,
        "spatial_mix_r": mix,
        "key_w": key_w,
        "receptance_w": receptance_w,
        "value_w": value_w,
    }


# ----------------------------------------------------------------------------
# Pure-JAX f32 reference (semantics of the PyTorch forward) for verification.
# ----------------------------------------------------------------------------
def reference_forward(x, params, patch_resolution, shift_pixel=1,
                      channel_gamma=0.25):
    mk = params["spatial_mix_k"]
    mr = params["spatial_mix_r"]
    if shift_pixel > 0:
        xx = bi_T_token_shift(x, shift_pixel, channel_gamma, patch_resolution)
        xk = x * mk + xx * (1 - mk)
        xr = x * mr + xx * (1 - mr)
    else:
        xk = xr = x
    k = xk @ params["key_w"].T
    k = jnp.square(jnp.maximum(k, 0.0))
    kv = k @ params["value_w"].T
    return jax.nn.sigmoid(xr @ params["receptance_w"].T) * kv


if __name__ == "__main__":
    # Small shapes: B=2, n_embd=32, hidden=4*32=128, patch_resolution=(8, 8)
    # -> T=64 tokens.  Channel dim is padded to 128 inside the wrapper.
    B, n_embd, n_layer, layer_id = 2, 32, 4, 1
    Hres, Wres = 8, 8
    T = Hres * Wres

    root = jax.random.PRNGKey(0)
    kx, kp = jax.random.split(root)
    x = jax.random.normal(kx, (B, T, n_embd), jnp.float32)
    params = init_params(kp, n_embd, n_layer, layer_id, hidden_rate=4)
    prepared = prepare_params(params)  # one-time transpose / bf16-cast / pad

    out = vrwkv_channel_mix(x, prepared, (Hres, Wres),
                            shift_pixel=1, channel_gamma=0.25, tm=256)
    out = jax.block_until_ready(out)

    ref = reference_forward(x, params, (Hres, Wres))
    assert out.shape == (B, T, n_embd)
    # bf16 MXU operands => loosen tolerance vs. the f32 reference.
    rel_err = jnp.max(jnp.abs(out - ref)) / (jnp.max(jnp.abs(ref)) + 1e-8)
    assert float(rel_err) < 2e-2, f"mismatch vs reference, rel_err={rel_err}"

    print("KERNEL_OK")
</pallas_src>

<mosaic_0001>
module attributes {stable_mosaic.version = 11 : i64} {
  func.func @channel_mix_kernel(%arg0: i32, %arg1: memref<256x128xf32, #tpu.memory_space<vmem>>, %arg2: memref<256x128xf32, #tpu.memory_space<vmem>>, %arg3: memref<1x128xf32, #tpu.memory_space<vmem>>, %arg4: memref<1x128xf32, #tpu.memory_space<vmem>>, %arg5: memref<128x128xbf16, #tpu.memory_space<vmem>>, %arg6: memref<128x128xbf16, #tpu.memory_space<vmem>>, %arg7: memref<128x128xbf16, #tpu.memory_space<vmem>>, %arg8: memref<256x128xf32, #tpu.memory_space<vmem>>) attributes {dimension_semantics = [#tpu.dimension_semantics<parallel>], iteration_bounds = array<i64: 1>, scalar_prefetch = 0 : i64, scratch_operands = 0 : i64, tpu.core_type = #tpu.core_type<tc>, window_params = [{transform_indices = @transform_0, window_bounds = array<i64: 256, 128>}, {transform_indices = @transform_1, window_bounds = array<i64: 256, 128>}, {pipeline_mode = #tpu.pipeline_mode<synchronous>, transform_indices = @transform_2, window_bounds = array<i64: 1, 128>}, {pipeline_mode = #tpu.pipeline_mode<synchronous>, transform_indices = @transform_3, window_bounds = array<i64: 1, 128>}, {pipeline_mode = #tpu.pipeline_mode<synchronous>, transform_indices = @transform_4, window_bounds = array<i64: 128, 128>}, {pipeline_mode = #tpu.pipeline_mode<synchronous>, transform_indices = @transform_5, window_bounds = array<i64: 128, 128>}, {pipeline_mode = #tpu.pipeline_mode<synchronous>, transform_indices = @transform_6, window_bounds = array<i64: 128, 128>}, {transform_indices = @transform_7, window_bounds = array<i64: 256, 128>}]} {
    %c0 = arith.constant 0 : index
    %c0_0 = arith.constant 0 : index
    %0 = vector.load %arg1[%c0, %c0_0] : memref<256x128xf32, #tpu.memory_space<vmem>>, vector<256x128xf32>
    %c0_1 = arith.constant 0 : index
    %c0_2 = arith.constant 0 : index
    %1 = vector.load %arg2[%c0_1, %c0_2] : memref<256x128xf32, #tpu.memory_space<vmem>>, vector<256x128xf32>
    %c0_3 = arith.constant 0 : index
    %c0_4 = arith.constant 0 : index
    %2 = vector.load %arg3[%c0_3, %c0_4] : memref<1x128xf32, #tpu.memory_space<vmem>>, vector<1x128xf32>
    %c0_5 = arith.constant 0 : index
    %c0_6 = arith.constant 0 : index
    %3 = vector.load %arg4[%c0_5, %c0_6] : memref<1x128xf32, #tpu.memory_space<vmem>>, vector<1x128xf32>
    %4 = vector.broadcast %2 : vector<1x128xf32> to vector<256x128xf32>
    %5 = arith.mulf %0, %4 : vector<256x128xf32>
    %cst = arith.constant 1.000000e+00 : f32
    %6 = vector.broadcast %cst : f32 to vector<1x128xf32>
    %7 = arith.subf %6, %2 : vector<1x128xf32>
    %8 = vector.broadcast %7 : vector<1x128xf32> to vector<256x128xf32>
    %9 = arith.mulf %1, %8 : vector<256x128xf32>
    %10 = arith.addf %5, %9 : vector<256x128xf32>
    %11 = vector.broadcast %3 : vector<1x128xf32> to vector<256x128xf32>
    %12 = arith.mulf %0, %11 : vector<256x128xf32>
    %cst_7 = arith.constant 1.000000e+00 : f32
    %13 = vector.broadcast %cst_7 : f32 to vector<1x128xf32>
    %14 = arith.subf %13, %3 : vector<1x128xf32>
    %15 = vector.broadcast %14 : vector<1x128xf32> to vector<256x128xf32>
    %16 = arith.mulf %1, %15 : vector<256x128xf32>
    %17 = arith.addf %12, %16 : vector<256x128xf32>
    %18 = arith.truncf %10 : vector<256x128xf32> to vector<256x128xbf16>
    %c0_8 = arith.constant 0 : index
    %c0_9 = arith.constant 0 : index
    %19 = vector.load %arg5[%c0_8, %c0_9] : memref<128x128xbf16, #tpu.memory_space<vmem>>, vector<128x128xbf16>
    %cst_10 = arith.constant dense<0.000000e+00> : vector<256x128xf32>
    %20 = tpu.matmul %18, %19, %cst_10 {dimension_numbers = #tpu.dot_dimension_numbers<[1], [0], [0], [1], [0, 0, 1, 1], [], []>} : vector<256x128xbf16>, vector<128x128xbf16>, vector<256x128xf32> -> vector<256x128xf32>
    %cst_11 = arith.constant 0.000000e+00 : f32
    %21 = vector.broadcast %cst_11 : f32 to vector<256x128xf32>
    %22 = arith.maximumf %20, %21 : vector<256x128xf32>
    %23 = arith.mulf %22, %22 : vector<256x128xf32>
    %24 = arith.truncf %23 : vector<256x128xf32> to vector<256x128xbf16>
    %c0_12 = arith.constant 0 : index
    %c0_13 = arith.constant 0 : index
    %25 = vector.load %arg7[%c0_12, %c0_13] : memref<128x128xbf16, #tpu.memory_space<vmem>>, vector<128x128xbf16>
    %cst_14 = arith.constant dense<0.000000e+00> : vector<256x128xf32>
    %26 = tpu.matmul %24, %25, %cst_14 {dimension_numbers = #tpu.dot_dimension_numbers<[1], [0], [0], [1], [0, 0, 1, 1], [], []>} : vector<256x128xbf16>, vector<128x128xbf16>, vector<256x128xf32> -> vector<256x128xf32>
    %27 = arith.truncf %17 : vector<256x128xf32> to vector<256x128xbf16>
    %c0_15 = arith.constant 0 : index
    %c0_16 = arith.constant 0 : index
    %28 = vector.load %arg6[%c0_15, %c0_16] : memref<128x128xbf16, #tpu.memory_space<vmem>>, vector<128x128xbf16>
    %cst_17 = arith.constant dense<0.000000e+00> : vector<256x128xf32>
    %29 = tpu.matmul %27, %28, %cst_17 {dimension_numbers = #tpu.dot_dimension_numbers<[1], [0], [0], [1], [0, 0, 1, 1], [], []>} : vector<256x128xbf16>, vector<128x128xbf16>, vector<256x128xf32> -> vector<256x128xf32>
    %30 = arith.negf %29 : vector<256x128xf32>
    %31 = math.exp %30 : vector<256x128xf32>
    %cst_18 = arith.constant 1.000000e+00 : f32
    %32 = vector.broadcast %cst_18 : f32 to vector<256x128xf32>
    %33 = arith.addf %32, %31 : vector<256x128xf32>
    %34 = arith.divf %32, %33 : vector<256x128xf32>
    %35 = arith.mulf %34, %26 : vector<256x128xf32>
    %c0_19 = arith.constant 0 : index
    %c0_20 = arith.constant 0 : index
    %36 = vector.load %arg8[%c0_19, %c0_20] : memref<256x128xf32, #tpu.memory_space<vmem>>, vector<256x128xf32>
    tpu.vector_store %arg8[%c0_19, %c0_20], %35 {strides = array<i32>} : memref<256x128xf32, #tpu.memory_space<vmem>>, vector<256x128xf32>,
    return
  }
  func.func @transform_0(%arg0: i32) -> (i32, i32) {
    %c0_i32 = arith.constant 0 : i32
    %c0_i32_0 = arith.constant 0 : i32
    return %arg0, %c0_i32 : i32, i32
  }
  func.func @transform_1(%arg0: i32) -> (i32, i32) {
    %c0_i32 = arith.constant 0 : i32
    %c0_i32_0 = arith.constant 0 : i32
    return %arg0, %c0_i32 : i32, i32
  }
  func.func @transform_2(%arg0: i32) -> (i32, i32) {
    %c0_i32 = arith.constant 0 : i32
    %c0_i32_0 = arith.constant 0 : i32
    %c0_i32_1 = arith.constant 0 : i32
    return %c0_i32, %c0_i32_0 : i32, i32
  }
  func.func @transform_3(%arg0: i32) -> (i32, i32) {
    %c0_i32 = arith.constant 0 : i32
    %c0_i32_0 = arith.constant 0 : i32
    %c0_i32_1 = arith.constant 0 : i32
    return %c0_i32, %c0_i32_0 : i32, i32
  }
  func.func @transform_4(%arg0: i32) -> (i32, i32) {
    %c0_i32 = arith.constant 0 : i32
    %c0_i32_0 = arith.constant 0 : i32
    %c0_i32_1 = arith.constant 0 : i32
    return %c0_i32, %c0_i32_0 : i32, i32
  }
  func.func @transform_5(%arg0: i32) -> (i32, i32) {
    %c0_i32 = arith.constant 0 : i32
    %c0_i32_0 = arith.constant 0 : i32
    %c0_i32_1 = arith.constant 0 : i32
    return %c0_i32, %c0_i32_0 : i32, i32
  }
  func.func @transform_6(%arg0: i32) -> (i32, i32) {
    %c0_i32 = arith.constant 0 : i32
    %c0_i32_0 = arith.constant 0 : i32
    %c0_i32_1 = arith.constant 0 : i32
    return %c0_i32, %c0_i32_0 : i32, i32
  }
  func.func @transform_7(%arg0: i32) -> (i32, i32) {
    %c0_i32 = arith.constant 0 : i32
    %c0_i32_0 = arith.constant 0 : i32
    return %arg0, %c0_i32 : i32, i32
  }
}

</mosaic_0001>

<llo_original>
// kernel: tpu_custom_call.1
$region0: #{tpu_custom_call.1}
  #allocation0 [shape = 'u32[]', space=smem, size = 0x4, offset = 0x4, fixed_abs, tag = 'smem constant byte address 0x4 - core index']
  #allocation1 [shape = 'u32[72,128]{1,0:T(1,128)}', space=vmem, size = 0x9000, scoped, tag = 'internal scratch']
  %s0 = inlined_call_operand.hbm [shape: f32[256,128], index: 0, kind: input, shape index: {}]
  %s1 = inlined_call_operand.hbm [shape: f32[256,128], index: 1, kind: input, shape index: {}]
  %s2 = inlined_call_operand.vmem [shape: f32[1,128], index: 2, kind: input, shape index: {}]
  %s3 = inlined_call_operand.vmem [shape: f32[1,128], index: 3, kind: input, shape index: {}]
  %s4 = inlined_call_operand.hbm [shape: bf16[128,128], index: 4, kind: input, shape index: {}]
  %s5 = inlined_call_operand.hbm [shape: bf16[128,128], index: 5, kind: input, shape index: {}]
  %s6 = inlined_call_operand.hbm [shape: bf16[128,128], index: 6, kind: input, shape index: {}]
  %s7 = inlined_call_operand.hbm [shape: f32[256,128], index: 7, kind: output, shape index: {}]
  %s8 = sld [smem:[#allocation0]]
  $region58: #{tpu_custom_call.1} parent=0
    _
  %s10 = ssub.s32 1, %s8
  %s11 = scalar_select 0, %s10, %s8
  $region1: #{tpu_custom_call.1} parent=0
    #allocation2 [shape = 'u8[131072]{0}', space=vmem, size = 0x20000, scoped, tag = 'input window, operand 0, single buffered']
    #allocation3 [shape = 's32[1]{0}', space=sflag, size = 0x4, scoped, tag = 'scoped memory for tpu_custom_call.1']
    #allocation4 [shape = 's32[1]{0}', space=sflag, size = 0x4, scoped, tag = 'scoped memory for tpu_custom_call.1']
    #allocation5 [shape = 'u8[131072]{0}', space=vmem, size = 0x20000, scoped, tag = 'input window, operand 1, single buffered']
    #allocation6 [shape = 's32[1]{0}', space=sflag, size = 0x4, scoped, tag = 'scoped memory for tpu_custom_call.1']
    #allocation7 [shape = 'u8[32768]{0}', space=vmem, size = 0x8000, scoped, tag = 'input window, operand 4, single buffered']
    #allocation8 [shape = 'u8[32768]{0}', space=vmem, size = 0x8000, scoped, tag = 'input window, operand 5, single buffered']
    #allocation9 [shape = 's32[1]{0}', space=sflag, size = 0x4, scoped, tag = 'scoped memory for tpu_custom_call.1']
    #allocation10 [shape = 'u8[32768]{0}', space=vmem, size = 0x8000, scoped, tag = 'input window, operand 6, single buffered']
    #allocation11 [shape = 'u8[131072]{0}', space=vmem, size = 0x20000, scoped, tag = 'output window, operand 0, single buffered']
    %12 = vsyncpa [#allocation3], 0
    %13 = vsyncpa [#allocation6], 0
    %14 = vsyncpa [#allocation9], 0
    %15 = vsyncpa [#allocation4], 0
    // Predicated region
    $region2: #{tpu_custom_call.1} parent=1 // pred_check
      _
    $region3: #{tpu_custom_call.1} parent=1 // pred_check_branch
      %17 = sbr.rel (0) target = $region5
    $region4: #{tpu_custom_call.1} parent=1 // pred_region
      %19 = vsyncadd [#allocation3], 0
      %s20 = sshll.u32 %s0, 4
      %s21 = int_to_ptr.hbm [resolvable:$true] %s20
      %s22 = sshll.u32 [#allocation2], 4
      %s23 = int_to_ptr.vmem [resolvable:$true] %s22
      %28 = dma.hbm_to_vmem [thread:$0]  %s21, 4096, %s23, [#allocation3], 128, 128, 8
    $region5: #{tpu_custom_call.1} parent=1 // pred_fallthru
      _
    // Predicated region
    $region6: #{tpu_custom_call.1} parent=1 // pred_check
      _
    $region7: #{tpu_custom_call.1} parent=1 // pred_check_branch
      %30 = sbr.rel (0) target = $region9
    $region8: #{tpu_custom_call.1} parent=1 // pred_region
      %32 = vsyncadd [#allocation6], 0
      %s33 = sshll.u32 %s1, 4
      %s34 = int_to_ptr.hbm [resolvable:$true] %s33
      %s35 = sshll.u32 [#allocation5], 4
      %s36 = int_to_ptr.vmem [resolvable:$true] %s35
      %41 = dma.hbm_to_vmem [thread:$0]  %s34, 4096, %s36, [#allocation6], 128, 128, 8
    $region9: #{tpu_custom_call.1} parent=1 // pred_fallthru
      _
    // Predicated region
    $region10: #{tpu_custom_call.1} parent=1 // pred_check
      _
    $region11: #{tpu_custom_call.1} parent=1 // pred_check_branch
      %43 = sbr.rel (0) target = $region13
    $region12: #{tpu_custom_call.1} parent=1 // pred_region
      _
    $region13: #{tpu_custom_call.1} parent=1 // pred_fallthru
      _
    // Predicated region
    $region14: #{tpu_custom_call.1} parent=1 // pred_check
      _
    $region15: #{tpu_custom_call.1} parent=1 // pred_check_branch
      %45 = sbr.rel (0) target = $region17
    $region16: #{tpu_custom_call.1} parent=1 // pred_region
      _
    $region17: #{tpu_custom_call.1} parent=1 // pred_fallthru
      _
    // Predicated region
    $region18: #{tpu_custom_call.1} parent=1 // pred_check
      _
    $region19: #{tpu_custom_call.1} parent=1 // pred_check_branch
      %47 = sbr.rel (0) target = $region21
    $region20: #{tpu_custom_call.1} parent=1 // pred_region
      %49 = vsyncadd [#allocation6], 0
      %s50 = sshll.u32 %s4, 4
      %s51 = int_to_ptr.hbm [resolvable:$true] %s50
      %s52 = sshll.u32 [#allocation7], 4
      %s53 = int_to_ptr.vmem [resolvable:$true] %s52
      %58 = dma.hbm_to_vmem [thread:$0]  %s51, 1024, %s53, [#allocation6], 64, 64, 4
    $region21: #{tpu_custom_call.1} parent=1 // pred_fallthru
      _
    // Predicated region
    $region22: #{tpu_custom_call.1} parent=1 // pred_check
      _
    $region23: #{tpu_custom_call.1} parent=1 // pred_check_branch
      %60 = sbr.rel (0) target = $region25
    $region24: #{tpu_custom_call.1} parent=1 // pred_region
      %62 = vsyncadd [#allocation9], 0
      %s63 = sshll.u32 %s5, 4
      %s64 = int_to_ptr.hbm [resolvable:$true] %s63
      %s65 = sshll.u32 [#allocation8], 4
      %s66 = int_to_ptr.vmem [resolvable:$true] %s65
      %71 = dma.hbm_to_vmem [thread:$0]  %s64, 1024, %s66, [#allocation9], 64, 64, 4
    $region25: #{tpu_custom_call.1} parent=1 // pred_fallthru
      _
    // Predicated region
    $region26: #{tpu_custom_call.1} parent=1 // pred_check
      _
    $region27: #{tpu_custom_call.1} parent=1 // pred_check_branch
      %73 = sbr.rel (0) target = $region29
    $region28: #{tpu_custom_call.1} parent=1 // pred_region
      %75 = vsyncadd [#allocation9], 0
      %s76 = sshll.u32 %s6, 4
      %s77 = int_to_ptr.hbm [resolvable:$true] %s76
      %s78 = sshll.u32 [#allocation10], 4
      %s79 = int_to_ptr.vmem [resolvable:$true] %s78
      %84 = dma.hbm_to_vmem [thread:$0]  %s77, 1024, %s79, [#allocation9], 64, 64, 4
    $region29: #{tpu_custom_call.1} parent=1 // pred_fallthru
      _
    // Predicated region
    $region30: #{tpu_custom_call.1} parent=1 // pred_check
      _
    $region31: #{tpu_custom_call.1} parent=1 // pred_check_branch
      %86 = sbr.rel (0) target = $region33
    $region32: #{tpu_custom_call.1} parent=1 // pred_region
      %88 = dma.done [#allocation3], 4096
    $region33: #{tpu_custom_call.1} parent=1 // pred_fallthru
      _
    // Predicated region
    $region34: #{tpu_custom_call.1} parent=1 // pred_check
      _
    $region35: #{tpu_custom_call.1} parent=1 // pred_check_branch
      %90 = sbr.rel (0) target = $region37
    $region36: #{tpu_custom_call.1} parent=1 // pred_region
      %92 = dma.done [#allocation6], 4096
    $region37: #{tpu_custom_call.1} parent=1 // pred_fallthru
      _
    // Predicated region
    $region38: #{tpu_custom_call.1} parent=1 // pred_check
      _
    $region39: #{tpu_custom_call.1} parent=1 // pred_check_branch
      %94 = sbr.rel (0) target = $region41
    $region40: #{tpu_custom_call.1} parent=1 // pred_region
      %96 = dma.done [#allocation6], 1024
    $region41: #{tpu_custom_call.1} parent=1 // pred_fallthru
      _
    // Predicated region
    $region42: #{tpu_custom_call.1} parent=1 // pred_check
      _
    $region43: #{tpu_custom_call.1} parent=1 // pred_check_branch
      %98 = sbr.rel (0) target = $region45
    $region44: #{tpu_custom_call.1} parent=1 // pred_region
      %100 = dma.done [#allocation9], 1024
    $region45: #{tpu_custom_call.1} parent=1 // pred_fallthru
      _
    // Predicated region
    $region46: #{tpu_custom_call.1} parent=1 // pred_check
      _
    $region47: #{tpu_custom_call.1} parent=1 // pred_check_branch
      %102 = sbr.rel (0) target = $region49
    $region48: #{tpu_custom_call.1} parent=1 // pred_region
      %104 = dma.done [#allocation9], 1024
    $region49: #{tpu_custom_call.1} parent=1 // pred_fallthru
      _
    %v105 = vld [vmem:[#allocation2] sm:$0xff]
    %v106 = vld [vmem:[#allocation2 + $0x8] sm:$0xff]
    %v107 = vld [vmem:[#allocation2 + $0x10] sm:$0xff]
    %v108 = vld [vmem:[#allocation2 + $0x18] sm:$0xff]
    %v109 = vld [vmem:[#allocation2 + $0x20] sm:$0xff]
    %v110 = vld [vmem:[#allocation2 + $0x28] sm:$0xff]
    %v111 = vld [vmem:[#allocation2 + $0x30] sm:$0xff]
    %v112 = vld [vmem:[#allocation2 + $0x38] sm:$0xff]
    %v113 = vld [vmem:[#allocation2 + $0x40] sm:$0xff]
    %v114 = vld [vmem:[#allocation2 + $0x48] sm:$0xff]
    %v115 = vld [vmem:[#allocation2 + $0x50] sm:$0xff]
    %v116 = vld [vmem:[#allocation2 + $0x58] sm:$0xff]
    %v117 = vld [vmem:[#allocation2 + $0x60] sm:$0xff]
    %v118 = vld [vmem:[#allocation2 + $0x68] sm:$0xff]
    %v119 = vld [vmem:[#allocation2 + $0x70] sm:$0xff]
    %v120 = vld [vmem:[#allocation2 + $0x78] sm:$0xff]
    %v121 = vld [vmem:[#allocation2 + $0x80] sm:$0xff]
    %v122 = vld [vmem:[#allocation2 + $0x88] sm:$0xff]
    %v123 = vld [vmem:[#allocation2 + $0x90] sm:$0xff]
    %v124 = vld [vmem:[#allocation2 + $0x98] sm:$0xff]
    %v125 = vld [vmem:[#allocation2 + $0xa0] sm:$0xff]
    %v126 = vld [vmem:[#allocation2 + $0xa8] sm:$0xff]
    %v127 = vld [vmem:[#allocation2 + $0xb0] sm:$0xff]
    %v128 = vld [vmem:[#allocation2 + $0xb8] sm:$0xff]
    %v129 = vld [vmem:[#allocation2 + $0xc0] sm:$0xff]
    %v130 = vld [vmem:[#allocation2 + $0xc8] sm:$0xff]
    %v131 = vld [vmem:[#allocation2 + $0xd0] sm:$0xff]
    %v132 = vld [vmem:[#allocation2 + $0xd8] sm:$0xff]
    %v133 = vld [vmem:[#allocation2 + $0xe0] sm:$0xff]
    %v134 = vld [vmem:[#allocation2 + $0xe8] sm:$0xff]
    %v135 = vld [vmem:[#allocation2 + $0xf0] sm:$0xff]
    %v136 = vld [vmem:[#allocation2 + $0xf8] sm:$0xff]
    %v137 = vld [vmem:[#allocation5] sm:$0xff]
    %v138 = vld [vmem:[#allocation5 + $0x8] sm:$0xff]
    %v139 = vld [vmem:[#allocation5 + $0x10] sm:$0xff]
    %v140 = vld [vmem:[#allocation5 + $0x18] sm:$0xff]
    %v141 = vld [vmem:[#allocation5 + $0x20] sm:$0xff]
    %v142 = vld [vmem:[#allocation5 + $0x28] sm:$0xff]
    %v143 = vld [vmem:[#allocation5 + $0x30] sm:$0xff]
    %v144 = vld [vmem:[#allocation5 + $0x38] sm:$0xff]
    %v145 = vld [vmem:[#allocation5 + $0x40] sm:$0xff]
    %v146 = vld [vmem:[#allocation5 + $0x48] sm:$0xff]
    %v147 = vld [vmem:[#allocation5 + $0x50] sm:$0xff]
    %v148 = vld [vmem:[#allocation5 + $0x58] sm:$0xff]
    %v149 = vld [vmem:[#allocation5 + $0x60] sm:$0xff]
    %v150 = vld [vmem:[#allocation5 + $0x68] sm:$0xff]
    %v151 = vld [vmem:[#allocation5 + $0x70] sm:$0xff]
    %v152 = vld [vmem:[#allocation5 + $0x78] sm:$0xff]
    %v153 = vld [vmem:[#allocation5 + $0x80] sm:$0xff]
    %v154 = vld [vmem:[#allocation5 + $0x88] sm:$0xff]
    %v155 = vld [vmem:[#allocation5 + $0x90] sm:$0xff]
    %v156 = vld [vmem:[#allocation5 + $0x98] sm:$0xff]
    %v157 = vld [vmem:[#allocation5 + $0xa0] sm:$0xff]
    %v158 = vld [vmem:[#allocation5 + $0xa8] sm:$0xff]
    %v159 = vld [vmem:[#allocation5 + $0xb0] sm:$0xff]
    %v160 = vld [vmem:[#allocation5 + $0xb8] sm:$0xff]
    %v161 = vld [vmem:[#allocation5 + $0xc0] sm:$0xff]
    %v162 = vld [vmem:[#allocation5 + $0xc8] sm:$0xff]
    %v163 = vld [vmem:[#allocation5 + $0xd0] sm:$0xff]
    %v164 = vld [vmem:[#allocation5 + $0xd8] sm:$0xff]
    %v165 = vld [vmem:[#allocation5 + $0xe0] sm:$0xff]
    %v166 = vld [vmem:[#allocation5 + $0xe8] sm:$0xff]
    %v167 = vld [vmem:[#allocation5 + $0xf0] sm:$0xff]
    %v168 = vld [vmem:[#allocation5 + $0xf8] sm:$0xff]
    %v169 = vld [vmem:[%s2] sm:$0x1]
    %v170 = vld [vmem:[%s3] sm:$0x1]
    %v172 = vperm.slane %v169, 0
    %v174 = vmul.f32 %v105, %v172
    %v175 = vmul.f32 %v106, %v172
    %v176 = vmul.f32 %v107, %v172
    %v177 = vmul.f32 %v108, %v172
    %v178 = vmul.f32 %v109, %v172
    %v179 = vmul.f32 %v110, %v172
    %v180 = vmul.f32 %v111, %v172
    %v181 = vmul.f32 %v112, %v172
    %v182 = vmul.f32 %v113, %v172
    %v183 = vmul.f32 %v114, %v172
    %v184 = vmul.f32 %v115, %v172
    %v185 = vmul.f32 %v116, %v172
    %v186 = vmul.f32 %v117, %v172
    %v187 = vmul.f32 %v118, %v172
    %v188 = vmul.f32 %v119, %v172
    %v189 = vmul.f32 %v120, %v172
    %v190 = vmul.f32 %v121, %v172
    %v191 = vmul.f32 %v122, %v172
    %v192 = vmul.f32 %v123, %v172
    %v193 = vmul.f32 %v124, %v172
    %v194 = vmul.f32 %v125, %v172
    %v195 = vmul.f32 %v126, %v172
    %v196 = vmul.f32 %v127, %v172
    %v197 = vmul.f32 %v128, %v172
    %v198 = vmul.f32 %v129, %v172
    %v199 = vmul.f32 %v130, %v172
    %v200 = vmul.f32 %v131, %v172
    %v201 = vmul.f32 %v132, %v172
    %v202 = vmul.f32 %v133, %v172
    %v203 = vmul.f32 %v134, %v172
    %v204 = vmul.f32 %v135, %v172
    %v205 = vmul.f32 %v136, %v172
    %v206 = vsub.f32 1.0, %v169
    %v208 = vperm.slane %v206, 0
    %v210 = vmul.f32 %v137, %v208
    %v211 = vmul.f32 %v138, %v208
    %v212 = vmul.f32 %v139, %v208
    %v213 = vmul.f32 %v140, %v208
    %v214 = vmul.f32 %v141, %v208
    %v215 = vmul.f32 %v142, %v208
    %v216 = vmul.f32 %v143, %v208
    %v217 = vmul.f32 %v144, %v208
    %v218 = vmul.f32 %v145, %v208
    %v219 = vmul.f32 %v146, %v208
    %v220 = vmul.f32 %v147, %v208
    %v221 = vmul.f32 %v148, %v208
    %v222 = vmul.f32 %v149, %v208
    %v223 = vmul.f32 %v150, %v208
    %v224 = vmul.f32 %v151, %v208
    %v225 = vmul.f32 %v152, %v208
    %v226 = vmul.f32 %v153, %v208
    %v227 = vmul.f32 %v154, %v208
    %v228 = vmul.f32 %v155, %v208
    %v229 = vmul.f32 %v156, %v208
    %v230 = vmul.f32 %v157, %v208
    %v231 = vmul.f32 %v158, %v208
    %v232 = vmul.f32 %v159, %v208
    %v233 = vmul.f32 %v160, %v208
    %v234 = vmul.f32 %v161, %v208
    %v235 = vmul.f32 %v162, %v208
    %v236 = vmul.f32 %v163, %v208
    %v237 = vmul.f32 %v164, %v208
    %v238 = vmul.f32 %v165, %v208
    %v239 = vmul.f32 %v166, %v208
    %v240 = vmul.f32 %v167, %v208
    %v241 = vmul.f32 %v168, %v208
    %v242 = vadd.f32 %v174, %v210
    %v243 = vadd.f32 %v175, %v211
    %v244 = vadd.f32 %v176, %v212
    %v245 = vadd.f32 %v177, %v213
    %v246 = vadd.f32 %v178, %v214
    %v247 = vadd.f32 %v179, %v215
    %v248 = vadd.f32 %v180, %v216
    %v249 = vadd.f32 %v181, %v217
    %v250 = vadd.f32 %v182, %v218
    %v251 = vadd.f32 %v183, %v219
    %v252 = vadd.f32 %v184, %v220
    %v253 = vadd.f32 %v185, %v221
    %v254 = vadd.f32 %v186, %v222
    %v255 = vadd.f32 %v187, %v223
    %v256 = vadd.f32 %v188, %v224
    %v257 = vadd.f32 %v189, %v225
    %v258 = vadd.f32 %v190, %v226
    %v259 = vadd.f32 %v191, %v227
    %v260 = vadd.f32 %v192, %v228
    %v261 = vadd.f32 %v193, %v229
    %v262 = vadd.f32 %v194, %v230
    %v263 = vadd.f32 %v195, %v231
    %v264 = vadd.f32 %v196, %v232
    %v265 = vadd.f32 %v197, %v233
    %v266 = vadd.f32 %v198, %v234
    %v267 = vadd.f32 %v199, %v235
    %v268 = vadd.f32 %v200, %v236
    %v269 = vadd.f32 %v201, %v237
    %v270 = vadd.f32 %v202, %v238
    %v271 = vadd.f32 %v203, %v239
    %v272 = vadd.f32 %v204, %v240
    %v273 = vadd.f32 %v205, %v241
    %v275 = vperm.slane %v170, 0
    %v277 = vmul.f32 %v105, %v275
    %v278 = vmul.f32 %v106, %v275
    %v279 = vmul.f32 %v107, %v275
    %v280 = vmul.f32 %v108, %v275
    %v281 = vmul.f32 %v109, %v275
    %v282 = vmul.f32 %v110, %v275
    %v283 = vmul.f32 %v111, %v275
    %v284 = vmul.f32 %v112, %v275
    %v285 = vmul.f32 %v113, %v275
    %v286 = vmul.f32 %v114, %v275
    %v287 = vmul.f32 %v115, %v275
    %v288 = vmul.f32 %v116, %v275
    %v289 = vmul.f32 %v117, %v275
    %v290 = vmul.f32 %v118, %v275
    %v291 = vmul.f32 %v119, %v275
    %v292 = vmul.f32 %v120, %v275
    %v293 = vmul.f32 %v121, %v275
    %v294 = vmul.f32 %v122, %v275
    %v295 = vmul.f32 %v123, %v275
    %v296 = vmul.f32 %v124, %v275
    %v297 = vmul.f32 %v125, %v275
    %v298 = vmul.f32 %v126, %v275
    %v299 = vmul.f32 %v127, %v275
    %v300 = vmul.f32 %v128, %v275
    %v301 = vmul.f32 %v129, %v275
    %v302 = vmul.f32 %v130, %v275
    %v303 = vmul.f32 %v131, %v275
    %v304 = vmul.f32 %v132, %v275
    %v305 = vmul.f32 %v133, %v275
    %v306 = vmul.f32 %v134, %v275
    %v307 = vmul.f32 %v135, %v275
    %v308 = vmul.f32 %v136, %v275
    %v309 = vsub.f32 1.0, %v170
    %v311 = vperm.slane %v309, 0
    %v313 = vmul.f32 %v137, %v311
    %v314 = vmul.f32 %v138, %v311
    %v315 = vmul.f32 %v139, %v311
    %v316 = vmul.f32 %v140, %v311
    %v317 = vmul.f32 %v141, %v311
    %v318 = vmul.f32 %v142, %v311
    %v319 = vmul.f32 %v143, %v311
    %v320 = vmul.f32 %v144, %v311
    %v321 = vmul.f32 %v145, %v311
    %v322 = vmul.f32 %v146, %v311
    %v323 = vmul.f32 %v147, %v311
    %v324 = vmul.f32 %v148, %v311
    %v325 = vmul.f32 %v149, %v311
    %v326 = vmul.f32 %v150, %v311
    %v327 = vmul.f32 %v151, %v311
    %v328 = vmul.f32 %v152, %v311
    %v329 = vmul.f32 %v153, %v311
    %v330 = vmul.f32 %v154, %v311
    %v331 = vmul.f32 %v155, %v311
    %v332 = vmul.f32 %v156, %v311
    %v333 = vmul.f32 %v157, %v311
    %v334 = vmul.f32 %v158, %v311
    %v335 = vmul.f32 %v159, %v311
    %v336 = vmul.f32 %v160, %v311
    %v337 = vmul.f32 %v161, %v311
    %v338 = vmul.f32 %v162, %v311
    %v339 = vmul.f32 %v163, %v311
    %v340 = vmul.f32 %v164, %v311
    %v341 = vmul.f32 %v165, %v311
    %v342 = vmul.f32 %v166, %v311
    %v343 = vmul.f32 %v167, %v311
    %v344 = vmul.f32 %v168, %v311
    %v345 = vadd.f32 %v277, %v313
    %v346 = vadd.f32 %v278, %v314
    %v347 = vadd.f32 %v279, %v315
    %v348 = vadd.f32 %v280, %v316
    %v349 = vadd.f32 %v281, %v317
    %v350 = vadd.f32 %v282, %v318
    %v351 = vadd.f32 %v283, %v319
    %v352 = vadd.f32 %v284, %v320
    %v353 = vadd.f32 %v285, %v321
    %v354 = vadd.f32 %v286, %v322
    %v355 = vadd.f32 %v287, %v323
    %v356 = vadd.f32 %v288, %v324
    %v357 = vadd.f32 %v289, %v325
    %v358 = vadd.f32 %v290, %v326
    %v359 = vadd.f32 %v291, %v327
    %v360 = vadd.f32 %v292, %v328
    %v361 = vadd.f32 %v293, %v329
    %v362 = vadd.f32 %v294, %v330
    %v363 = vadd.f32 %v295, %v331
    %v364 = vadd.f32 %v296, %v332
    %v365 = vadd.f32 %v297, %v333
    %v366 = vadd.f32 %v298, %v334
    %v367 = vadd.f32 %v299, %v335
    %v368 = vadd.f32 %v300, %v336
    %v369 = vadd.f32 %v301, %v337
    %v370 = vadd.f32 %v302, %v338
    %v371 = vadd.f32 %v303, %v339
    %v372 = vadd.f32 %v304, %v340
    %v373 = vadd.f32 %v305, %v341
    %v374 = vadd.f32 %v306, %v342
    %v375 = vadd.f32 %v307, %v343
    %v376 = vadd.f32 %v308, %v344
    %v377 = vpack.c.bf16 %v243, %v242
    %v378 = vpack.c.bf16 %v245, %v244
    %v379 = vpack.c.bf16 %v247, %v246
    %v380 = vpack.c.bf16 %v249, %v248
    %v381 = vpack.c.bf16 %v251, %v250
    %v382 = vpack.c.bf16 %v253, %v252
    %v383 = vpack.c.bf16 %v255, %v254
    %v384 = vpack.c.bf16 %v257, %v256
    %v385 = vpack.c.bf16 %v259, %v258
    %v386 = vpack.c.bf16 %v261, %v260
    %v387 = vpack.c.bf16 %v263, %v262
    %v388 = vpack.c.bf16 %v265, %v264
    %v389 = vpack.c.bf16 %v267, %v266
    %v390 = vpack.c.bf16 %v269, %v268
    %v391 = vpack.c.bf16 %v271, %v270
    %v392 = vpack.c.bf16 %v273, %v272
    %v393 = vld [vmem:[#allocation7] sm:$0xf]
    %v394 = vld [vmem:[#allocation7 + $0x4] sm:$0xf]
    %v395 = vld [vmem:[#allocation7 + $0x8] sm:$0xf]
    %v396 = vld [vmem:[#allocation7 + $0xc] sm:$0xf]
    %v397 = vld [vmem:[#allocation7 + $0x10] sm:$0xf]
    %v398 = vld [vmem:[#allocation7 + $0x14] sm:$0xf]
    %v399 = vld [vmem:[#allocation7 + $0x18] sm:$0xf]
    %v400 = vld [vmem:[#allocation7 + $0x1c] sm:$0xf]
    %v401 = vld [vmem:[#allocation7 + $0x20] sm:$0xf]
    %v402 = vld [vmem:[#allocation7 + $0x24] sm:$0xf]
    %v403 = vld [vmem:[#allocation7 + $0x28] sm:$0xf]
    %v404 = vld [vmem:[#allocation7 + $0x2c] sm:$0xf]
    %v405 = vld [vmem:[#allocation7 + $0x30] sm:$0xf]
    %v406 = vld [vmem:[#allocation7 + $0x34] sm:$0xf]
    %v407 = vld [vmem:[#allocation7 + $0x38] sm:$0xf]
    %v408 = vld [vmem:[#allocation7 + $0x3c] sm:$0xf]
    %v425 = vunpack.c.l.b16 %v393
    %v426 = vunpack.c.l.b16 %v394
    %v427 = vunpack.c.l.b16 %v395
    %v428 = vunpack.c.l.b16 %v396
    %v429 = vunpack.c.l.b16 %v397
    %v430 = vunpack.c.l.b16 %v398
    %v431 = vunpack.c.l.b16 %v399
    %v432 = vunpack.c.l.b16 %v400
    %v433 = vunpack.c.l.b16 %v401
    %v434 = vunpack.c.l.b16 %v402
    %v435 = vunpack.c.l.b16 %v403
    %v436 = vunpack.c.l.b16 %v404
    %v437 = vunpack.c.l.b16 %v405
    %v438 = vunpack.c.l.b16 %v406
    %v439 = vunpack.c.l.b16 %v407
    %v440 = vunpack.c.l.b16 %v408
    %v441 = vpack.c.b16 %v426, %v425
    %v442 = vpack.c.b16 %v428, %v427
    %v443 = vpack.c.b16 %v430, %v429
    %v444 = vpack.c.b16 %v432, %v431
    %v445 = vpack.c.b16 %v434, %v433
    %v446 = vpack.c.b16 %v436, %v435
    %v447 = vpack.c.b16 %v438, %v437
    %v448 = vpack.c.b16 %v440, %v439
    %457 = vmatpush.bf16.msra.mxu0 %v448
    %458 = vmatpush.bf16.msra.mxu0 %v447
    %459 = vmatpush.bf16.msra.mxu0 %v446
    %460 = vmatpush.bf16.msra.mxu0 %v445
    %461 = vmatpush.bf16.msra.mxu0 %v444
    %462 = vmatpush.bf16.msra.mxu0 %v443
    %463 = vmatpush.bf16.msra.mxu0 %v442
    %464 = vmatpush.bf16.msra.mxu0 %v441
    %465 = vmatmul.bf16.gmra.mxu0 %v377
    %v466 = vpop.f32.mrf.mxu0
    %v467 = vadd.f32 0.0, %v466
    %v468 = vpop.f32.mrf.mxu0
    %v469 = vadd.f32 0.0, %v468
    %470 = vmatmul.bf16.gmra.mxu0 %v378
    %v471 = vpop.f32.mrf.mxu0
    %v472 = vadd.f32 0.0, %v471
    %v473 = vpop.f32.mrf.mxu0
    %v474 = vadd.f32 0.0, %v473
    %475 = vmatmul.bf16.gmra.mxu0 %v379
    %v476 = vpop.f32.mrf.mxu0
    %v477 = vadd.f32 0.0, %v476
    %v478 = vpop.f32.mrf.mxu0
    %v479 = vadd.f32 0.0, %v478
    %480 = vmatmul.bf16.gmra.mxu0 %v380
    %v481 = vpop.f32.mrf.mxu0
    %v482 = vadd.f32 0.0, %v481
    %v483 = vpop.f32.mrf.mxu0
    %v484 = vadd.f32 0.0, %v483
    %485 = vmatmul.bf16.gmra.mxu0 %v381
    %v486 = vpop.f32.mrf.mxu0
    %v487 = vadd.f32 0.0, %v486
    %v488 = vpop.f32.mrf.mxu0
    %v489 = vadd.f32 0.0, %v488
    %490 = vmatmul.bf16.gmra.mxu0 %v382
    %v491 = vpop.f32.mrf.mxu0
    %v492 = vadd.f32 0.0, %v491
    %v493 = vpop.f32.mrf.mxu0
    %v494 = vadd.f32 0.0, %v493
    %495 = vmatmul.bf16.gmra.mxu0 %v383
    %v496 = vpop.f32.mrf.mxu0
    %v497 = vadd.f32 0.0, %v496
    %v498 = vpop.f32.mrf.mxu0
    %v499 = vadd.f32 0.0, %v498
    %500 = vmatmul.bf16.gmra.mxu0 %v384
    %v501 = vpop.f32.mrf.mxu0
    %v502 = vadd.f32 0.0, %v501
    %v503 = vpop.f32.mrf.mxu0
    %v504 = vadd.f32 0.0, %v503
    %505 = vmatmul.bf16.gmra.mxu0 %v385
    %v506 = vpop.f32.mrf.mxu0
    %v507 = vadd.f32 0.0, %v506
    %v508 = vpop.f32.mrf.mxu0
    %v509 = vadd.f32 0.0, %v508
    %510 = vmatmul.bf16.gmra.mxu0 %v386
    %v511 = vpop.f32.mrf.mxu0
    %v512 = vadd.f32 0.0, %v511
    %v513 = vpop.f32.mrf.mxu0
    %v514 = vadd.f32 0.0, %v513
    %515 = vmatmul.bf16.gmra.mxu0 %v387
    %v516 = vpop.f32.mrf.mxu0
    %v517 = vadd.f32 0.0, %v516
    %v518 = vpop.f32.mrf.mxu0
    %v519 = vadd.f32 0.0, %v518
    %520 = vmatmul.bf16.gmra.mxu0 %v388
    %v521 = vpop.f32.mrf.mxu0
    %v522 = vadd.f32 0.0, %v521
    %v523 = vpop.f32.mrf.mxu0
    %v524 = vadd.f32 0.0, %v523
    %525 = vmatmul.bf16.gmra.mxu0 %v389
    %v526 = vpop.f32.mrf.mxu0
    %v527 = vadd.f32 0.0, %v526
    %v528 = vpop.f32.mrf.mxu0
    %v529 = vadd.f32 0.0, %v528
    %530 = vmatmul.bf16.gmra.mxu0 %v390
    %v531 = vpop.f32.mrf.mxu0
    %v532 = vadd.f32 0.0, %v531
    %v533 = vpop.f32.mrf.mxu0
    %v534 = vadd.f32 0.0, %v533
    %535 = vmatmul.bf16.gmra.mxu0 %v391
    %v536 = vpop.f32.mrf.mxu0
    %v537 = vadd.f32 0.0, %v536
    %v538 = vpop.f32.mrf.mxu0
    %v539 = vadd.f32 0.0, %v538
    %540 = vmatmul.bf16.gmra.mxu0 %v392
    %v541 = vpop.f32.mrf.mxu0
    %v542 = vadd.f32 0.0, %v541
    %v543 = vpop.f32.mrf.mxu0
    %v544 = vadd.f32 0.0, %v543
    %545 = vdwg.mxu0
    %v546 = vmax.f32 %v467, 0.0
    %v547 = vmax.f32 %v469, 0.0
    %v548 = vmax.f32 %v472, 0.0
    %v549 = vmax.f32 %v474, 0.0
    %v550 = vmax.f32 %v477, 0.0
    %v551 = vmax.f32 %v479, 0.0
    %v552 = vmax.f32 %v482, 0.0
    %v553 = vmax.f32 %v484, 0.0
    %v554 = vmax.f32 %v487, 0.0
    %v555 = vmax.f32 %v489, 0.0
    %v556 = vmax.f32 %v492, 0.0
    %v557 = vmax.f32 %v494, 0.0
    %v558 = vmax.f32 %v497, 0.0
    %v559 = vmax.f32 %v499, 0.0
    %v560 = vmax.f32 %v502, 0.0
    %v561 = vmax.f32 %v504, 0.0
    %v562 = vmax.f32 %v507, 0.0
    %v563 = vmax.f32 %v509, 0.0
    %v564 = vmax.f32 %v512, 0.0
    %v565 = vmax.f32 %v514, 0.0
    %v566 = vmax.f32 %v517, 0.0
    %v567 = vmax.f32 %v519, 0.0
    %v568 = vmax.f32 %v522, 0.0
    %v569 = vmax.f32 %v524, 0.0
    %v570 = vmax.f32 %v527, 0.0
    %v571 = vmax.f32 %v529, 0.0
    %v572 = vmax.f32 %v532, 0.0
    %v573 = vmax.f32 %v534, 0.0
    %v574 = vmax.f32 %v537, 0.0
    %v575 = vmax.f32 %v539, 0.0
    %v576 = vmax.f32 %v542, 0.0
    %v577 = vmax.f32 %v544, 0.0
    %v578 = vmul.f32 %v546, %v546
    %v579 = vmul.f32 %v547, %v547
    %v580 = vmul.f32 %v548, %v548
    %v581 = vmul.f32 %v549, %v549
    %v582 = vmul.f32 %v550, %v550
    %v583 = vmul.f32 %v551, %v551
    %v584 = vmul.f32 %v552, %v552
    %v585 = vmul.f32 %v553, %v553
    %v586 = vmul.f32 %v554, %v554
    %v587 = vmul.f32 %v555, %v555
    %v588 = vmul.f32 %v556, %v556
    %v589 = vmul.f32 %v557, %v557
    %v590 = vmul.f32 %v558, %v558
    %v591 = vmul.f32 %v559, %v559
    %v592 = vmul.f32 %v560, %v560
    %v593 = vmul.f32 %v561, %v561
    %v594 = vmul.f32 %v562, %v562
    %v595 = vmul.f32 %v563, %v563
    %v596 = vmul.f32 %v564, %v564
    %v597 = vmul.f32 %v565, %v565
    %v598 = vmul.f32 %v566, %v566
    %v599 = vmul.f32 %v567, %v567
    %v600 = vmul.f32 %v568, %v568
    %v601 = vmul.f32 %v569, %v569
    %v602 = vmul.f32 %v570, %v570
    %v603 = vmul.f32 %v571, %v571
    %v604 = vmul.f32 %v572, %v572
    %v605 = vmul.f32 %v573, %v573
    %v606 = vmul.f32 %v574, %v574
    %v607 = vmul.f32 %v575, %v575
    %v608 = vmul.f32 %v576, %v576
    %v609 = vmul.f32 %v577, %v577
    %v610 = vpack.c.bf16 %v579, %v578
    %v611 = vpack.c.bf16 %v581, %v580
    %v612 = vpack.c.bf16 %v583, %v582
    %v613 = vpack.c.bf16 %v585, %v584
    %v614 = vpack.c.bf16 %v587, %v586
    %v615 = vpack.c.bf16 %v589, %v588
    %v616 = vpack.c.bf16 %v591, %v590
    %v617 = vpack.c.bf16 %v593, %v592
    %v618 = vpack.c.bf16 %v595, %v594
    %v619 = vpack.c.bf16 %v597, %v596
    %v620 = vpack.c.bf16 %v599, %v598
    %v621 = vpack.c.bf16 %v601, %v600
    %v622 = vpack.c.bf16 %v603, %v602
    %v623 = vpack.c.bf16 %v605, %v604
    %v624 = vpack.c.bf16 %v607, %v606
    %v625 = vpack.c.bf16 %v609, %v608
    %v626 = vld [vmem:[#allocation10] sm:$0xf]
    %v627 = vld [vmem:[#allocation10 + $0x4] sm:$0xf]
    %v628 = vld [vmem:[#allocation10 + $0x8] sm:$0xf]
    %v629 = vld [vmem:[#allocation10 + $0xc] sm:$0xf]
    %v630 = vld [vmem:[#allocation10 + $0x10] sm:$0xf]
    %v631 = vld [vmem:[#allocation10 + $0x14] sm:$0xf]
    %v632 = vld [vmem:[#allocation10 + $0x18] sm:$0xf]
    %v633 = vld [vmem:[#allocation10 + $0x1c] sm:$0xf]
    %v634 = vld [vmem:[#allocation10 + $0x20] sm:$0xf]
    %v635 = vld [vmem:[#allocation10 + $0x24] sm:$0xf]
    %v636 = vld [vmem:[#allocation10 + $0x28] sm:$0xf]
    %v637 = vld [vmem:[#allocation10 + $0x2c] sm:$0xf]
    %v638 = vld [vmem:[#allocation10 + $0x30] sm:$0xf]
    %v639 = vld [vmem:[#allocation10 + $0x34] sm:$0xf]
    %v640 = vld [vmem:[#allocation10 + $0x38] sm:$0xf]
    %v641 = vld [vmem:[#allocation10 + $0x3c] sm:$0xf]
    %v658 = vunpack.c.l.b16 %v626
    %v659 = vunpack.c.l.b16 %v627
    %v660 = vunpack.c.l.b16 %v628
    %v661 = vunpack.c.l.b16 %v629
    %v662 = vunpack.c.l.b16 %v630
    %v663 = vunpack.c.l.b16 %v631
    %v664 = vunpack.c.l.b16 %v632
    %v665 = vunpack.c.l.b16 %v633
    %v666 = vunpack.c.l.b16 %v634
    %v667 = vunpack.c.l.b16 %v635
    %v668 = vunpack.c.l.b16 %v636
    %v669 = vunpack.c.l.b16 %v637
    %v670 = vunpack.c.l.b16 %v638
    %v671 = vunpack.c.l.b16 %v639
    %v672 = vunpack.c.l.b16 %v640
    %v673 = vunpack.c.l.b16 %v641
    %v674 = vpack.c.b16 %v659, %v658
    %v675 = vpack.c.b16 %v661, %v660
    %v676 = vpack.c.b16 %v663, %v662
    %v677 = vpack.c.b16 %v665, %v664
    %v678 = vpack.c.b16 %v667, %v666
    %v679 = vpack.c.b16 %v669, %v668
    %v680 = vpack.c.b16 %v671, %v670
    %v681 = vpack.c.b16 %v673, %v672
    %690 = vmatpush.bf16.msra.mxu0 %v681
    %691 = vmatpush.bf16.msra.mxu0 %v680
    %692 = vmatpush.bf16.msra.mxu0 %v679
    %693 = vmatpush.bf16.msra.mxu0 %v678
    %694 = vmatpush.bf16.msra.mxu0 %v677
    %695 = vmatpush.bf16.msra.mxu0 %v676
    %696 = vmatpush.bf16.msra.mxu0 %v675
    %697 = vmatpush.bf16.msra.mxu0 %v674
    %698 = vmatmul.bf16.gmra.mxu0 %v610
    %v699 = vpop.f32.mrf.mxu0
    %v700 = vadd.f32 0.0, %v699
    %v701 = vpop.f32.mrf.mxu0
    %v702 = vadd.f32 0.0, %v701
    %703 = vmatmul.bf16.gmra.mxu0 %v611
    %v704 = vpop.f32.mrf.mxu0
    %v705 = vadd.f32 0.0, %v704
    %v706 = vpop.f32.mrf.mxu0
    %v707 = vadd.f32 0.0, %v706
    %708 = vmatmul.bf16.gmra.mxu0 %v612
    %v709 = vpop.f32.mrf.mxu0
    %v710 = vadd.f32 0.0, %v709
    %v711 = vpop.f32.mrf.mxu0
    %v712 = vadd.f32 0.0, %v711
    %713 = vmatmul.bf16.gmra.mxu0 %v613
    %v714 = vpop.f32.mrf.mxu0
    %v715 = vadd.f32 0.0, %v714
    %v716 = vpop.f32.mrf.mxu0
    %v717 = vadd.f32 0.0, %v716
    %718 = vmatmul.bf16.gmra.mxu0 %v614
    %v719 = vpop.f32.mrf.mxu0
    %v720 = vadd.f32 0.0, %v719
    %v721 = vpop.f32.mrf.mxu0
    %v722 = vadd.f32 0.0, %v721
    %723 = vmatmul.bf16.gmra.mxu0 %v615
    %v724 = vpop.f32.mrf.mxu0
    %v725 = vadd.f32 0.0, %v724
    %v726 = vpop.f32.mrf.mxu0
    %v727 = vadd.f32 0.0, %v726
    %728 = vmatmul.bf16.gmra.mxu0 %v616
    %v729 = vpop.f32.mrf.mxu0
    %v730 = vadd.f32 0.0, %v729
    %v731 = vpop.f32.mrf.mxu0
    %v732 = vadd.f32 0.0, %v731
    %733 = vmatmul.bf16.gmra.mxu0 %v617
    %v734 = vpop.f32.mrf.mxu0
    %v735 = vadd.f32 0.0, %v734
    %v736 = vpop.f32.mrf.mxu0
    %v737 = vadd.f32 0.0, %v736
    %738 = vmatmul.bf16.gmra.mxu0 %v618
    %v739 = vpop.f32.mrf.mxu0
    %v740 = vadd.f32 0.0, %v739
    %v741 = vpop.f32.mrf.mxu0
    %v742 = vadd.f32 0.0, %v741
    %743 = vmatmul.bf16.gmra.mxu0 %v619
    %v744 = vpop.f32.mrf.mxu0
    %v745 = vadd.f32 0.0, %v744
    %v746 = vpop.f32.mrf.mxu0
    %v747 = vadd.f32 0.0, %v746
    %748 = vmatmul.bf16.gmra.mxu0 %v620
    %v749 = vpop.f32.mrf.mxu0
    %v750 = vadd.f32 0.0, %v749
    %v751 = vpop.f32.mrf.mxu0
    %v752 = vadd.f32 0.0, %v751
    %753 = vmatmul.bf16.gmra.mxu0 %v621
    %v754 = vpop.f32.mrf.mxu0
    %v755 = vadd.f32 0.0, %v754
    %v756 = vpop.f32.mrf.mxu0
    %v757 = vadd.f32 0.0, %v756
    %758 = vmatmul.bf16.gmra.mxu0 %v622
    %v759 = vpop.f32.mrf.mxu0
    %v760 = vadd.f32 0.0, %v759
    %v761 = vpop.f32.mrf.mxu0
    %v762 = vadd.f32 0.0, %v761
    %763 = vmatmul.bf16.gmra.mxu0 %v623
    %v764 = vpop.f32.mrf.mxu0
    %v765 = vadd.f32 0.0, %v764
    %v766 = vpop.f32.mrf.mxu0
    %v767 = vadd.f32 0.0, %v766
    %768 = vmatmul.bf16.gmra.mxu0 %v624
    %v769 = vpop.f32.mrf.mxu0
    %v770 = vadd.f32 0.0, %v769
    %v771 = vpop.f32.mrf.mxu0
    %v772 = vadd.f32 0.0, %v771
    %773 = vmatmul.bf16.gmra.mxu0 %v625
    %v774 = vpop.f32.mrf.mxu0
    %v775 = vadd.f32 0.0, %v774
    %v776 = vpop.f32.mrf.mxu0
    %v777 = vadd.f32 0.0, %v776
    %778 = vdwg.mxu0
    %v779 = vpack.c.bf16 %v346, %v345
    %v780 = vpack.c.bf16 %v348, %v347
    %v781 = vpack.c.bf16 %v350, %v349
    %v782 = vpack.c.bf16 %v352, %v351
    %v783 = vpack.c.bf16 %v354, %v353
    %v784 = vpack.c.bf16 %v356, %v355
    %v785 = vpack.c.bf16 %v358, %v357
    %v786 = vpack.c.bf16 %v360, %v359
    %v787 = vpack.c.bf16 %v362, %v361
    %v788 = vpack.c.bf16 %v364, %v363
    %v789 = vpack.c.bf16 %v366, %v365
    %v790 = vpack.c.bf16 %v368, %v367
    %v791 = vpack.c.bf16 %v370, %v369
    %v792 = vpack.c.bf16 %v372, %v371
    %v793 = vpack.c.bf16 %v374, %v373
    %v794 = vpack.c.bf16 %v376, %v375
    %v795 = vld [vmem:[#allocation8] sm:$0xf]
    %v796 = vld [vmem:[#allocation8 + $0x4] sm:$0xf]
    %v797 = vld [vmem:[#allocation8 + $0x8] sm:$0xf]
    %v798 = vld [vmem:[#allocation8 + $0xc] sm:$0xf]
    %v799 = vld [vmem:[#allocation8 + $0x10] sm:$0xf]
    %v800 = vld [vmem:[#allocation8 + $0x14] sm:$0xf]
    %v801 = vld [vmem:[#allocation8 + $0x18] sm:$0xf]
    %v802 = vld [vmem:[#allocation8 + $0x1c] sm:$0xf]
    %v803 = vld [vmem:[#allocation8 + $0x20] sm:$0xf]
    %v804 = vld [vmem:[#allocation8 + $0x24] sm:$0xf]
    %v805 = vld [vmem:[#allocation8 + $0x28] sm:$0xf]
    %v806 = vld [vmem:[#allocation8 + $0x2c] sm:$0xf]
    %v807 = vld [vmem:[#allocation8 + $0x30] sm:$0xf]
    %v808 = vld [vmem:[#allocation8 + $0x34] sm:$0xf]
    %v809 = vld [vmem:[#allocation8 + $0x38] sm:$0xf]
    %v810 = vld [vmem:[#allocation8 + $0x3c] sm:$0xf]
    %v827 = vunpack.c.l.b16 %v795
    %v828 = vunpack.c.l.b16 %v796
    %v829 = vunpack.c.l.b16 %v797
    %v830 = vunpack.c.l.b16 %v798
    %v831 = vunpack.c.l.b16 %v799
    %v832 = vunpack.c.l.b16 %v800
    %v833 = vunpack.c.l.b16 %v801
    %v834 = vunpack.c.l.b16 %v802
    %v835 = vunpack.c.l.b16 %v803
    %v836 = vunpack.c.l.b16 %v804
    %v837 = vunpack.c.l.b16 %v805
    %v838 = vunpack.c.l.b16 %v806
    %v839 = vunpack.c.l.b16 %v807
    %v840 = vunpack.c.l.b16 %v808
    %v841 = vunpack.c.l.b16 %v809
    %v842 = vunpack.c.l.b16 %v810
    %v843 = vpack.c.b16 %v828, %v827
    %v844 = vpack.c.b16 %v830, %v829
    %v845 = vpack.c.b16 %v832, %v831
    %v846 = vpack.c.b16 %v834, %v833
    %v847 = vpack.c.b16 %v836, %v835
    %v848 = vpack.c.b16 %v838, %v837
    %v849 = vpack.c.b16 %v840, %v839
    %v850 = vpack.c.b16 %v842, %v841
    %859 = vmatpush.bf16.msra.mxu0 %v850
    %860 = vmatpush.bf16.msra.mxu0 %v849
    %861 = vmatpush.bf16.msra.mxu0 %v848
    %862 = vmatpush.bf16.msra.mxu0 %v847
    %863 = vmatpush.bf16.msra.mxu0 %v846
    %864 = vmatpush.bf16.msra.mxu0 %v845
    %865 = vmatpush.bf16.msra.mxu0 %v844
    %866 = vmatpush.bf16.msra.mxu0 %v843
    %867 = vmatmul.bf16.gmra.mxu0 %v779
    %v868 = vpop.f32.mrf.mxu0
    %v869 = vadd.f32 0.0, %v868
    %v870 = vpop.f32.mrf.mxu0
    %v871 = vadd.f32 0.0, %v870
    %872 = vmatmul.bf16.gmra.mxu0 %v780
    %v873 = vpop.f32.mrf.mxu0
    %v874 = vadd.f32 0.0, %v873
    %v875 = vpop.f32.mrf.mxu0
    %v876 = vadd.f32 0.0, %v875
    %877 = vmatmul.bf16.gmra.mxu0 %v781
    %v878 = vpop.f32.mrf.mxu0
    %v879 = vadd.f32 0.0, %v878
    %v880 = vpop.f32.mrf.mxu0
    %v881 = vadd.f32 0.0, %v880
    %882 = vmatmul.bf16.gmra.mxu0 %v782
    %v883 = vpop.f32.mrf.mxu0
    %v884 = vadd.f32 0.0, %v883
    %v885 = vpop.f32.mrf.mxu0
    %v886 = vadd.f32 0.0, %v885
    %887 = vmatmul.bf16.gmra.mxu0 %v783
    %v888 = vpop.f32.mrf.mxu0
    %v889 = vadd.f32 0.0, %v888
    %v890 = vpop.f32.mrf.mxu0
    %v891 = vadd.f32 0.0, %v890
    %892 = vmatmul.bf16.gmra.mxu0 %v784
    %v893 = vpop.f32.mrf.mxu0
    %v894 = vadd.f32 0.0, %v893
    %v895 = vpop.f32.mrf.mxu0
    %v896 = vadd.f32 0.0, %v895
    %897 = vmatmul.bf16.gmra.mxu0 %v785
    %v898 = vpop.f32.mrf.mxu0
    %v899 = vadd.f32 0.0, %v898
    %v900 = vpop.f32.mrf.mxu0
    %v901 = vadd.f32 0.0, %v900
    %902 = vmatmul.bf16.gmra.mxu0 %v786
    %v903 = vpop.f32.mrf.mxu0
    %v904 = vadd.f32 0.0, %v903
    %v905 = vpop.f32.mrf.mxu0
    %v906 = vadd.f32 0.0, %v905
    %907 = vmatmul.bf16.gmra.mxu0 %v787
    %v908 = vpop.f32.mrf.mxu0
    %v909 = vadd.f32 0.0, %v908
    %v910 = vpop.f32.mrf.mxu0
    %v911 = vadd.f32 0.0, %v910
    %912 = vmatmul.bf16.gmra.mxu0 %v788
    %v913 = vpop.f32.mrf.mxu0
    %v914 = vadd.f32 0.0, %v913
    %v915 = vpop.f32.mrf.mxu0
    %v916 = vadd.f32 0.0, %v915
    %917 = vmatmul.bf16.gmra.mxu0 %v789
    %v918 = vpop.f32.mrf.mxu0
    %v919 = vadd.f32 0.0, %v918
    %v920 = vpop.f32.mrf.mxu0
    %v921 = vadd.f32 0.0, %v920
    %922 = vmatmul.bf16.gmra.mxu0 %v790
    %v923 = vpop.f32.mrf.mxu0
    %v924 = vadd.f32 0.0, %v923
    %v925 = vpop.f32.mrf.mxu0
    %v926 = vadd.f32 0.0, %v925
    %927 = vmatmul.bf16.gmra.mxu0 %v791
    %v928 = vpop.f32.mrf.mxu0
    %v929 = vadd.f32 0.0, %v928
    %v930 = vpop.f32.mrf.mxu0
    %v931 = vadd.f32 0.0, %v930
    %932 = vmatmul.bf16.gmra.mxu0 %v792
    %v933 = vpop.f32.mrf.mxu0
    %v934 = vadd.f32 0.0, %v933
    %v935 = vpop.f32.mrf.mxu0
    %v936 = vadd.f32 0.0, %v935
    %937 = vmatmul.bf16.gmra.mxu0 %v793
    %v938 = vpop.f32.mrf.mxu0
    %v939 = vadd.f32 0.0, %v938
    %v940 = vpop.f32.mrf.mxu0
    %v941 = vadd.f32 0.0, %v940
    %942 = vmatmul.bf16.gmra.mxu0 %v794
    %v943 = vpop.f32.mrf.mxu0
    %v944 = vadd.f32 0.0, %v943
    %v945 = vpop.f32.mrf.mxu0
    %v946 = vadd.f32 0.0, %v945
    %947 = vdwg.mxu0
    %v948 = vxor.u32 %v869, 2147483648
    %v949 = vxor.u32 %v871, 2147483648
    %v950 = vxor.u32 %v874, 2147483648
    %v951 = vxor.u32 %v876, 2147483648
    %v952 = vxor.u32 %v879, 2147483648
    %v953 = vxor.u32 %v881, 2147483648
    %v954 = vxor.u32 %v884, 2147483648
    %v955 = vxor.u32 %v886, 2147483648
    %v956 = vxor.u32 %v889, 2147483648
    %v957 = vxor.u32 %v891, 2147483648
    %v958 = vxor.u32 %v894, 2147483648
    %v959 = vxor.u32 %v896, 2147483648
    %v960 = vxor.u32 %v899, 2147483648
    %v961 = vxor.u32 %v901, 2147483648
    %v962 = vxor.u32 %v904, 2147483648
    %v963 = vxor.u32 %v906, 2147483648
    %v964 = vxor.u32 %v909, 2147483648
    %v965 = vxor.u32 %v911, 2147483648
    %v966 = vxor.u32 %v914, 2147483648
    %v967 = vxor.u32 %v916, 2147483648
    %v968 = vxor.u32 %v919, 2147483648
    %v969 = vxor.u32 %v921, 2147483648
    %v970 = vxor.u32 %v924, 2147483648
    %v971 = vxor.u32 %v926, 2147483648
    %v972 = vxor.u32 %v929, 2147483648
    %v973 = vxor.u32 %v931, 2147483648
    %v974 = vxor.u32 %v934, 2147483648
    %v975 = vxor.u32 %v936, 2147483648
    %v976 = vxor.u32 %v939, 2147483648
    %v977 = vxor.u32 %v941, 2147483648
    %v978 = vxor.u32 %v944, 2147483648
    %v979 = vxor.u32 %v946, 2147483648
    %v980 = vmul.f32 %v948, 1.442695
    %v981 = vpow.pop %v980
    %v982 = vmul.f32 %v949, 1.442695
    %v983 = vpow.pop %v982
    %v984 = vmul.f32 %v950, 1.442695
    %v985 = vpow.pop %v984
    %v986 = vmul.f32 %v951, 1.442695
    %v987 = vpow.pop %v986
    %v988 = vmul.f32 %v952, 1.442695
    %v989 = vpow.pop %v988
    %v990 = vmul.f32 %v953, 1.442695
    %v991 = vpow.pop %v990
    %v992 = vmul.f32 %v954, 1.442695
    %v993 = vpow.pop %v992
    %v994 = vmul.f32 %v955, 1.442695
    %v995 = vpow.pop %v994
    %v996 = vmul.f32 %v956, 1.442695
    %v997 = vpow.pop %v996
    %v998 = vmul.f32 %v957, 1.442695
    %v999 = vpow.pop %v998
    %v1000 = vmul.f32 %v958, 1.442695
    %v1001 = vpow.pop %v1000
    %v1002 = vmul.f32 %v959, 1.442695
    %v1003 = vpow.pop %v1002
    %v1004 = vmul.f32 %v960, 1.442695
    %v1005 = vpow.pop %v1004
    %v1006 = vmul.f32 %v961, 1.442695
    %v1007 = vpow.pop %v1006
    %v1008 = vmul.f32 %v962, 1.442695
    %v1009 = vpow.pop %v1008
    %v1010 = vmul.f32 %v963, 1.442695
    %v1011 = vpow.pop %v1010
    %v1012 = vmul.f32 %v964, 1.442695
    %v1013 = vpow.pop %v1012
    %v1014 = vmul.f32 %v965, 1.442695
    %v1015 = vpow.pop %v1014
    %v1016 = vmul.f32 %v966, 1.442695
    %v1017 = vpow.pop %v1016
    %v1018 = vmul.f32 %v967, 1.442695
    %v1019 = vpow.pop %v1018
    %v1020 = vmul.f32 %v968, 1.442695
    %v1021 = vpow.pop %v1020
    %v1022 = vmul.f32 %v969, 1.442695
    %v1023 = vpow.pop %v1022
    %v1024 = vmul.f32 %v970, 1.442695
    %v1025 = vpow.pop %v1024
    %v1026 = vmul.f32 %v971, 1.442695
    %v1027 = vpow.pop %v1026
    %v1028 = vmul.f32 %v972, 1.442695
    %v1029 = vpow.pop %v1028
    %v1030 = vmul.f32 %v973, 1.442695
    %v1031 = vpow.pop %v1030
    %v1032 = vmul.f32 %v974, 1.442695
    %v1033 = vpow.pop %v1032
    %v1034 = vmul.f32 %v975, 1.442695
    %v1035 = vpow.pop %v1034
    %v1036 = vmul.f32 %v976, 1.442695
    %v1037 = vpow.pop %v1036
    %v1038 = vmul.f32 %v977, 1.442695
    %v1039 = vpow.pop %v1038
    %v1040 = vmul.f32 %v978, 1.442695
    %v1041 = vpow.pop %v1040
    %v1042 = vmul.f32 %v979, 1.442695
    %v1043 = vpow.pop %v1042
    %v1044 = vadd.f32 %v981, 1.0
    %v1045 = vadd.f32 %v983, 1.0
    %v1046 = vadd.f32 %v985, 1.0
    %v1047 = vadd.f32 %v987, 1.0
    %v1048 = vadd.f32 %v989, 1.0
    %v1049 = vadd.f32 %v991, 1.0
    %v1050 = vadd.f32 %v993, 1.0
    %v1051 = vadd.f32 %v995, 1.0
    %v1052 = vadd.f32 %v997, 1.0
    %v1053 = vadd.f32 %v999, 1.0
    %v1054 = vadd.f32 %v1001, 1.0
    %v1055 = vadd.f32 %v1003, 1.0
    %v1056 = vadd.f32 %v1005, 1.0
    %v1057 = vadd.f32 %v1007, 1.0
    %v1058 = vadd.f32 %v1009, 1.0
    %v1059 = vadd.f32 %v1011, 1.0
    %v1060 = vadd.f32 %v1013, 1.0
    %v1061 = vadd.f32 %v1015, 1.0
    %v1062 = vadd.f32 %v1017, 1.0
    %v1063 = vadd.f32 %v1019, 1.0
    %v1064 = vadd.f32 %v1021, 1.0
    %v1065 = vadd.f32 %v1023, 1.0
    %v1066 = vadd.f32 %v1025, 1.0
    %v1067 = vadd.f32 %v1027, 1.0
    %v1068 = vadd.f32 %v1029, 1.0
    %v1069 = vadd.f32 %v1031, 1.0
    %v1070 = vadd.f32 %v1033, 1.0
    %v1071 = vadd.f32 %v1035, 1.0
    %v1072 = vadd.f32 %v1037, 1.0
    %v1073 = vadd.f32 %v1039, 1.0
    %v1074 = vadd.f32 %v1041, 1.0
    %v1075 = vadd.f32 %v1043, 1.0
    %v1076 = vrcp.pop %v1044
    %v1077 = vmul.f32 %v1044, %v1076
    %v1078 = vsub.f32 1.0, %v1077
    %v1079 = vmul.f32 %v1076, %v1078
    %v1080 = vadd.f32 %v1076, %v1079
    %vm1081 = vweird.f32 %v1044
    %vm1082 = vweird.f32 %v1076
    %vm1083 = vmor %vm1081, %vm1082
    %v1084 = vsel %vm1083, %v1076, %v1080
    %v1085 = vand.u32 2147483647, %v1044
    %vm1086 = vcmp.eq.f32.partialorder %v1085, 8.507059e+37
    %v1087 = vand.u32 %v1044, 2147483648
    %v1088 = vor.u32 1.1754944e-38, %v1087
    %v1089 = vsel %vm1086, %v1088, %v1084
    %v1090 = vmul.f32 1.0, %v1089
    %v1091 = vrcp.pop %v1045
    %v1092 = vmul.f32 %v1045, %v1091
    %v1093 = vsub.f32 1.0, %v1092
    %v1094 = vmul.f32 %v1091, %v1093
    %v1095 = vadd.f32 %v1091, %v1094
    %vm1096 = vweird.f32 %v1045
    %vm1097 = vweird.f32 %v1091
    %vm1098 = vmor %vm1096, %vm1097
    %v1099 = vsel %vm1098, %v1091, %v1095
    %v1100 = vand.u32 2147483647, %v1045
    %vm1101 = vcmp.eq.f32.partialorder %v1100, 8.507059e+37
    %v1102 = vand.u32 %v1045, 2147483648
    %v1103 = vor.u32 1.1754944e-38, %v1102
    %v1104 = vsel %vm1101, %v1103, %v1099
    %v1105 = vmul.f32 1.0, %v1104
    %v1106 = vrcp.pop %v1046
    %v1107 = vmul.f32 %v1046, %v1106
    %v1108 = vsub.f32 1.0, %v1107
    %v1109 = vmul.f32 %v1106, %v1108
    %v1110 = vadd.f32 %v1106, %v1109
    %vm1111 = vweird.f32 %v1046
    %vm1112 = vweird.f32 %v1106
    %vm1113 = vmor %vm1111, %vm1112
    %v1114 = vsel %vm1113, %v1106, %v1110
    %v1115 = vand.u32 2147483647, %v1046
    %vm1116 = vcmp.eq.f32.partialorder %v1115, 8.507059e+37
    %v1117 = vand.u32 %v1046, 2147483648
    %v1118 = vor.u32 1.1754944e-38, %v1117
    %v1119 = vsel %vm1116, %v1118, %v1114
    %v1120 = vmul.f32 1.0, %v1119
    %v1121 = vrcp.pop %v1047
    %v1122 = vmul.f32 %v1047, %v1121
    %v1123 = vsub.f32 1.0, %v1122
    %v1124 = vmul.f32 %v1121, %v1123
    %v1125 = vadd.f32 %v1121, %v1124
    %vm1126 = vweird.f32 %v1047
    %vm1127 = vweird.f32 %v1121
    %vm1128 = vmor %vm1126, %vm1127
    %v1129 = vsel %vm1128, %v1121, %v1125
    %v1130 = vand.u32 2147483647, %v1047
    %vm1131 = vcmp.eq.f32.partialorder %v1130, 8.507059e+37
    %v1132 = vand.u32 %v1047, 2147483648
    %v1133 = vor.u32 1.1754944e-38, %v1132
    %v1134 = vsel %vm1131, %v1133, %v1129
    %v1135 = vmul.f32 1.0, %v1134
    %v1136 = vrcp.pop %v1048
    %v1137 = vmul.f32 %v1048, %v1136
    %v1138 = vsub.f32 1.0, %v1137
    %v1139 = vmul.f32 %v1136, %v1138
    %v1140 = vadd.f32 %v1136, %v1139
    %vm1141 = vweird.f32 %v1048
    %vm1142 = vweird.f32 %v1136
    %vm1143 = vmor %vm1141, %vm1142
    %v1144 = vsel %vm1143, %v1136, %v1140
    %v1145 = vand.u32 2147483647, %v1048
    %vm1146 = vcmp.eq.f32.partialorder %v1145, 8.507059e+37
    %v1147 = vand.u32 %v1048, 2147483648
    %v1148 = vor.u32 1.1754944e-38, %v1147
    %v1149 = vsel %vm1146, %v1148, %v1144
    %v1150 = vmul.f32 1.0, %v1149
    %v1151 = vrcp.pop %v1049
    %v1152 = vmul.f32 %v1049, %v1151
    %v1153 = vsub.f32 1.0, %v1152
    %v1154 = vmul.f32 %v1151, %v1153
    %v1155 = vadd.f32 %v1151, %v1154
    %vm1156 = vweird.f32 %v1049
    %vm1157 = vweird.f32 %v1151
    %vm1158 = vmor %vm1156, %vm1157
    %v1159 = vsel %vm1158, %v1151, %v1155
    %v1160 = vand.u32 2147483647, %v1049
    %vm1161 = vcmp.eq.f32.partialorder %v1160, 8.507059e+37
    %v1162 = vand.u32 %v1049, 2147483648
    %v1163 = vor.u32 1.1754944e-38, %v1162
    %v1164 = vsel %vm1161, %v1163, %v1159
    %v1165 = vmul.f32 1.0, %v1164
    %v1166 = vrcp.pop %v1050
    %v1167 = vmul.f32 %v1050, %v1166
    %v1168 = vsub.f32 1.0, %v1167
    %v1169 = vmul.f32 %v1166, %v1168
    %v1170 = vadd.f32 %v1166, %v1169
    %vm1171 = vweird.f32 %v1050
    %vm1172 = vweird.f32 %v1166
    %vm1173 = vmor %vm1171, %vm1172
    %v1174 = vsel %vm1173, %v1166, %v1170
    %v1175 = vand.u32 2147483647, %v1050
    %vm1176 = vcmp.eq.f32.partialorder %v1175, 8.507059e+37
    %v1177 = vand.u32 %v1050, 2147483648
    %v1178 = vor.u32 1.1754944e-38, %v1177
    %v1179 = vsel %vm1176, %v1178, %v1174
    %v1180 = vmul.f32 1.0, %v1179
    %v1181 = vrcp.pop %v1051
    %v1182 = vmul.f32 %v1051, %v1181
    %v1183 = vsub.f32 1.0, %v1182
    %v1184 = vmul.f32 %v1181, %v1183
    %v1185 = vadd.f32 %v1181, %v1184
    %vm1186 = vweird.f32 %v1051
    %vm1187 = vweird.f32 %v1181
    %vm1188 = vmor %vm1186, %vm1187
    %v1189 = vsel %vm1188, %v1181, %v1185
    %v1190 = vand.u32 2147483647, %v1051
    %vm1191 = vcmp.eq.f32.partialorder %v1190, 8.507059e+37
    %v1192 = vand.u32 %v1051, 2147483648
    %v1193 = vor.u32 1.1754944e-38, %v1192
    %v1194 = vsel %vm1191, %v1193, %v1189
    %v1195 = vmul.f32 1.0, %v1194
    %v1196 = vrcp.pop %v1052
    %v1197 = vmul.f32 %v1052, %v1196
    %v1198 = vsub.f32 1.0, %v1197
    %v1199 = vmul.f32 %v1196, %v1198
    %v1200 = vadd.f32 %v1196, %v1199
    %vm1201 = vweird.f32 %v1052
    %vm1202 = vweird.f32 %v1196
    %vm1203 = vmor %vm1201, %vm1202
    %v1204 = vsel %vm1203, %v1196, %v1200
    %v1205 = vand.u32 2147483647, %v1052
    %vm1206 = vcmp.eq.f32.partialorder %v1205, 8.507059e+37
    %v1207 = vand.u32 %v1052, 2147483648
    %v1208 = vor.u32 1.1754944e-38, %v1207
    %v1209 = vsel %vm1206, %v1208, %v1204
    %v1210 = vmul.f32 1.0, %v1209
    %v1211 = vrcp.pop %v1053
    %v1212 = vmul.f32 %v1053, %v1211
    %v1213 = vsub.f32 1.0, %v1212
    %v1214 = vmul.f32 %v1211, %v1213
    %v1215 = vadd.f32 %v1211, %v1214
    %vm1216 = vweird.f32 %v1053
    %vm1217 = vweird.f32 %v1211
    %vm1218 = vmor %vm1216, %vm1217
    %v1219 = vsel %vm1218, %v1211, %v1215
    %v1220 = vand.u32 2147483647, %v1053
    %vm1221 = vcmp.eq.f32.partialorder %v1220, 8.507059e+37
    %v1222 = vand.u32 %v1053, 2147483648
    %v1223 = vor.u32 1.1754944e-38, %v1222
    %v1224 = vsel %vm1221, %v1223, %v1219
    %v1225 = vmul.f32 1.0, %v1224
    %v1226 = vrcp.pop %v1054
    %v1227 = vmul.f32 %v1054, %v1226
    %v1228 = vsub.f32 1.0, %v1227
    %v1229 = vmul.f32 %v1226, %v1228
    %v1230 = vadd.f32 %v1226, %v1229
    %vm1231 = vweird.f32 %v1054
    %vm1232 = vweird.f32 %v1226
    %vm1233 = vmor %vm1231, %vm1232
    %v1234 = vsel %vm1233, %v1226, %v1230
    %v1235 = vand.u32 2147483647, %v1054
    %vm1236 = vcmp.eq.f32.partialorder %v1235, 8.507059e+37
    %v1237 = vand.u32 %v1054, 2147483648
    %v1238 = vor.u32 1.1754944e-38, %v1237
    %v1239 = vsel %vm1236, %v1238, %v1234
    %v1240 = vmul.f32 1.0, %v1239
    %v1241 = vrcp.pop %v1055
    %v1242 = vmul.f32 %v1055, %v1241
    %v1243 = vsub.f32 1.0, %v1242
    %v1244 = vmul.f32 %v1241, %v1243
    %v1245 = vadd.f32 %v1241, %v1244
    %vm1246 = vweird.f32 %v1055
    %vm1247 = vweird.f32 %v1241
    %vm1248 = vmor %vm1246, %vm1247
    %v1249 = vsel %vm1248, %v1241, %v1245
    %v1250 = vand.u32 2147483647, %v1055
    %vm1251 = vcmp.eq.f32.partialorder %v1250, 8.507059e+37
    %v1252 = vand.u32 %v1055, 2147483648
    %v1253 = vor.u32 1.1754944e-38, %v1252
    %v1254 = vsel %vm1251, %v1253, %v1249
    %v1255 = vmul.f32 1.0, %v1254
    %v1256 = vrcp.pop %v1056
    %v1257 = vmul.f32 %v1056, %v1256
    %v1258 = vsub.f32 1.0, %v1257
    %v1259 = vmul.f32 %v1256, %v1258
    %v1260 = vadd.f32 %v1256, %v1259
    %vm1261 = vweird.f32 %v1056
    %vm1262 = vweird.f32 %v1256
    %vm1263 = vmor %vm1261, %vm1262
    %v1264 = vsel %vm1263, %v1256, %v1260
    %v1265 = vand.u32 2147483647, %v1056
    %vm1266 = vcmp.eq.f32.partialorder %v1265, 8.507059e+37
    %v1267 = vand.u32 %v1056, 2147483648
    %v1268 = vor.u32 1.1754944e-38, %v1267
    %v1269 = vsel %vm1266, %v1268, %v1264
    %v1270 = vmul.f32 1.0, %v1269
    %v1271 = vrcp.pop %v1057
    %v1272 = vmul.f32 %v1057, %v1271
    %v1273 = vsub.f32 1.0, %v1272
    %v1274 = vmul.f32 %v1271, %v1273
    %v1275 = vadd.f32 %v1271, %v1274
    %vm1276 = vweird.f32 %v1057
    %vm1277 = vweird.f32 %v1271
    %vm1278 = vmor %vm1276, %vm1277
    %v1279 = vsel %vm1278, %v1271, %v1275
    %v1280 = vand.u32 2147483647, %v1057
    %vm1281 = vcmp.eq.f32.partialorder %v1280, 8.507059e+37
    %v1282 = vand.u32 %v1057, 2147483648
    %v1283 = vor.u32 1.1754944e-38, %v1282
    %v1284 = vsel %vm1281, %v1283, %v1279
    %v1285 = vmul.f32 1.0, %v1284
    %v1286 = vrcp.pop %v1058
    %v1287 = vmul.f32 %v1058, %v1286
    %v1288 = vsub.f32 1.0, %v1287
    %v1289 = vmul.f32 %v1286, %v1288
    %v1290 = vadd.f32 %v1286, %v1289
    %vm1291 = vweird.f32 %v1058
    %vm1292 = vweird.f32 %v1286
    %vm1293 = vmor %vm1291, %vm1292
    %v1294 = vsel %vm1293, %v1286, %v1290
    %v1295 = vand.u32 2147483647, %v1058
    %vm1296 = vcmp.eq.f32.partialorder %v1295, 8.507059e+37
    %v1297 = vand.u32 %v1058, 2147483648
    %v1298 = vor.u32 1.1754944e-38, %v1297
    %v1299 = vsel %vm1296, %v1298, %v1294
    %v1300 = vmul.f32 1.0, %v1299
    %v1301 = vrcp.pop %v1059
    %v1302 = vmul.f32 %v1059, %v1301
    %v1303 = vsub.f32 1.0, %v1302
    %v1304 = vmul.f32 %v1301, %v1303
    %v1305 = vadd.f32 %v1301, %v1304
    %vm1306 = vweird.f32 %v1059
    %vm1307 = vweird.f32 %v1301
    %vm1308 = vmor %vm1306, %vm1307
    %v1309 = vsel %vm1308, %v1301, %v1305
    %v1310 = vand.u32 2147483647, %v1059
    %vm1311 = vcmp.eq.f32.partialorder %v1310, 8.507059e+37
    %v1312 = vand.u32 %v1059, 2147483648
    %v1313 = vor.u32 1.1754944e-38, %v1312
    %v1314 = vsel %vm1311, %v1313, %v1309
    %v1315 = vmul.f32 1.0, %v1314
    %v1316 = vrcp.pop %v1060
    %v1317 = vmul.f32 %v1060, %v1316
    %v1318 = vsub.f32 1.0, %v1317
    %v1319 = vmul.f32 %v1316, %v1318
    %v1320 = vadd.f32 %v1316, %v1319
    %vm1321 = vweird.f32 %v1060
    %vm1322 = vweird.f32 %v1316
    %vm1323 = vmor %vm1321, %vm1322
    %v1324 = vsel %vm1323, %v1316, %v1320
    %v1325 = vand.u32 2147483647, %v1060
    %vm1326 = vcmp.eq.f32.partialorder %v1325, 8.507059e+37
    %v1327 = vand.u32 %v1060, 2147483648
    %v1328 = vor.u32 1.1754944e-38, %v1327
    %v1329 = vsel %vm1326, %v1328, %v1324
    %v1330 = vmul.f32 1.0, %v1329
    %v1331 = vrcp.pop %v1061
    %v1332 = vmul.f32 %v1061, %v1331
    %v1333 = vsub.f32 1.0, %v1332
    %v1334 = vmul.f32 %v1331, %v1333
    %v1335 = vadd.f32 %v1331, %v1334
    %vm1336 = vweird.f32 %v1061
    %vm1337 = vweird.f32 %v1331
    %vm1338 = vmor %vm1336, %vm1337
    %v1339 = vsel %vm1338, %v1331, %v1335
    %v1340 = vand.u32 2147483647, %v1061
    %vm1341 = vcmp.eq.f32.partialorder %v1340, 8.507059e+37
    %v1342 = vand.u32 %v1061, 2147483648
    %v1343 = vor.u32 1.1754944e-38, %v1342
    %v1344 = vsel %vm1341, %v1343, %v1339
    %v1345 = vmul.f32 1.0, %v1344
    %v1346 = vrcp.pop %v1062
    %v1347 = vmul.f32 %v1062, %v1346
    %v1348 = vsub.f32 1.0, %v1347
    %v1349 = vmul.f32 %v1346, %v1348
    %v1350 = vadd.f32 %v1346, %v1349
    %vm1351 = vweird.f32 %v1062
    %vm1352 = vweird.f32 %v1346
    %vm1353 = vmor %vm1351, %vm1352
    %v1354 = vsel %vm1353, %v1346, %v1350
    %v1355 = vand.u32 2147483647, %v1062
    %vm1356 = vcmp.eq.f32.partialorder %v1355, 8.507059e+37
    %v1357 = vand.u32 %v1062, 2147483648
    %v1358 = vor.u32 1.1754944e-38, %v1357
    %v1359 = vsel %vm1356, %v1358, %v1354
    %v1360 = vmul.f32 1.0, %v1359
    %v1361 = vrcp.pop %v1063
    %v1362 = vmul.f32 %v1063, %v1361
    %v1363 = vsub.f32 1.0, %v1362
    %v1364 = vmul.f32 %v1361, %v1363
    %v1365 = vadd.f32 %v1361, %v1364
    %vm1366 = vweird.f32 %v1063
    %vm1367 = vweird.f32 %v1361
    %vm1368 = vmor %vm1366, %vm1367
    %v1369 = vsel %vm1368, %v1361, %v1365
    %v1370 = vand.u32 2147483647, %v1063
    %vm1371 = vcmp.eq.f32.partialorder %v1370, 8.507059e+37
    %v1372 = vand.u32 %v1063, 2147483648
    %v1373 = vor.u32 1.1754944e-38, %v1372
    %v1374 = vsel %vm1371, %v1373, %v1369
    %v1375 = vmul.f32 1.0, %v1374
    %v1376 = vrcp.pop %v1064
    %v1377 = vmul.f32 %v1064, %v1376
    %v1378 = vsub.f32 1.0, %v1377
    %v1379 = vmul.f32 %v1376, %v1378
    %v1380 = vadd.f32 %v1376, %v1379
    %vm1381 = vweird.f32 %v1064
    %vm1382 = vweird.f32 %v1376
    %vm1383 = vmor %vm1381, %vm1382
    %v1384 = vsel %vm1383, %v1376, %v1380
    %v1385 = vand.u32 2147483647, %v1064
    %vm1386 = vcmp.eq.f32.partialorder %v1385, 8.507059e+37
    %v1387 = vand.u32 %v1064, 2147483648
    %v1388 = vor.u32 1.1754944e-38, %v1387
    %v1389 = vsel %vm1386, %v1388, %v1384
    %v1390 = vmul.f32 1.0, %v1389
    %v1391 = vrcp.pop %v1065
    %v1392 = vmul.f32 %v1065, %v1391
    %v1393 = vsub.f32 1.0, %v1392
    %v1394 = vmul.f32 %v1391, %v1393
    %v1395 = vadd.f32 %v1391, %v1394
    %vm1396 = vweird.f32 %v1065
    %vm1397 = vweird.f32 %v1391
    %vm1398 = vmor %vm1396, %vm1397
    %v1399 = vsel %vm1398, %v1391, %v1395
    %v1400 = vand.u32 2147483647, %v1065
    %vm1401 = vcmp.eq.f32.partialorder %v1400, 8.507059e+37
    %v1402 = vand.u32 %v1065, 2147483648
    %v1403 = vor.u32 1.1754944e-38, %v1402
    %v1404 = vsel %vm1401, %v1403, %v1399
    %v1405 = vmul.f32 1.0, %v1404
    %v1406 = vrcp.pop %v1066
    %v1407 = vmul.f32 %v1066, %v1406
    %v1408 = vsub.f32 1.0, %v1407
    %v1409 = vmul.f32 %v1406, %v1408
    %v1410 = vadd.f32 %v1406, %v1409
    %vm1411 = vweird.f32 %v1066
    %vm1412 = vweird.f32 %v1406
    %vm1413 = vmor %vm1411, %vm1412
    %v1414 = vsel %vm1413, %v1406, %v1410
    %v1415 = vand.u32 2147483647, %v1066
    %vm1416 = vcmp.eq.f32.partialorder %v1415, 8.507059e+37
    %v1417 = vand.u32 %v1066, 2147483648
    %v1418 = vor.u32 1.1754944e-38, %v1417
    %v1419 = vsel %vm1416, %v1418, %v1414
    %v1420 = vmul.f32 1.0, %v1419
    %v1421 = vrcp.pop %v1067
    %v1422 = vmul.f32 %v1067, %v1421
    %v1423 = vsub.f32 1.0, %v1422
    %v1424 = vmul.f32 %v1421, %v1423
    %v1425 = vadd.f32 %v1421, %v1424
    %vm1426 = vweird.f32 %v1067
    %vm1427 = vweird.f32 %v1421
    %vm1428 = vmor %vm1426, %vm1427
    %v1429 = vsel %vm1428, %v1421, %v1425
    %v1430 = vand.u32 2147483647, %v1067
    %vm1431 = vcmp.eq.f32.partialorder %v1430, 8.507059e+37
    %v1432 = vand.u32 %v1067, 2147483648
    %v1433 = vor.u32 1.1754944e-38, %v1432
    %v1434 = vsel %vm1431, %v1433, %v1429
    %v1435 = vmul.f32 1.0, %v1434
    %v1436 = vrcp.pop %v1068
    %v1437 = vmul.f32 %v1068, %v1436
    %v1438 = vsub.f32 1.0, %v1437
    %v1439 = vmul.f32 %v1436, %v1438
    %v1440 = vadd.f32 %v1436, %v1439
    %vm1441 = vweird.f32 %v1068
    %vm1442 = vweird.f32 %v1436
    %vm1443 = vmor %vm1441, %vm1442
    %v1444 = vsel %vm1443, %v1436, %v1440
    %v1445 = vand.u32 2147483647, %v1068
    %vm1446 = vcmp.eq.f32.partialorder %v1445, 8.507059e+37
    %v1447 = vand.u32 %v1068, 2147483648
    %v1448 = vor.u32 1.1754944e-38, %v1447
    %v1449 = vsel %vm1446, %v1448, %v1444
    %v1450 = vmul.f32 1.0, %v1449
    %v1451 = vrcp.pop %v1069
    %v1452 = vmul.f32 %v1069, %v1451
    %v1453 = vsub.f32 1.0, %v1452
    %v1454 = vmul.f32 %v1451, %v1453
    %v1455 = vadd.f32 %v1451, %v1454
    %vm1456 = vweird.f32 %v1069
    %vm1457 = vweird.f32 %v1451
    %vm1458 = vmor %vm1456, %vm1457
    %v1459 = vsel %vm1458, %v1451, %v1455
    %v1460 = vand.u32 2147483647, %v1069
    %vm1461 = vcmp.eq.f32.partialorder %v1460, 8.507059e+37
    %v1462 = vand.u32 %v1069, 2147483648
    %v1463 = vor.u32 1.1754944e-38, %v1462
    %v1464 = vsel %vm1461, %v1463, %v1459
    %v1465 = vmul.f32 1.0, %v1464
    %v1466 = vrcp.pop %v1070
    %v1467 = vmul.f32 %v1070, %v1466
    %v1468 = vsub.f32 1.0, %v1467
    %v1469 = vmul.f32 %v1466, %v1468
    %v1470 = vadd.f32 %v1466, %v1469
    %vm1471 = vweird.f32 %v1070
    %vm1472 = vweird.f32 %v1466
    %vm1473 = vmor %vm1471, %vm1472
    %v1474 = vsel %vm1473, %v1466, %v1470
    %v1475 = vand.u32 2147483647, %v1070
    %vm1476 = vcmp.eq.f32.partialorder %v1475, 8.507059e+37
    %v1477 = vand.u32 %v1070, 2147483648
    %v1478 = vor.u32 1.1754944e-38, %v1477
    %v1479 = vsel %vm1476, %v1478, %v1474
    %v1480 = vmul.f32 1.0, %v1479
    %v1481 = vrcp.pop %v1071
    %v1482 = vmul.f32 %v1071, %v1481
    %v1483 = vsub.f32 1.0, %v1482
    %v1484 = vmul.f32 %v1481, %v1483
    %v1485 = vadd.f32 %v1481, %v1484
    %vm1486 = vweird.f32 %v1071
    %vm1487 = vweird.f32 %v1481
    %vm1488 = vmor %vm1486, %vm1487
    %v1489 = vsel %vm1488, %v1481, %v1485
    %v1490 = vand.u32 2147483647, %v1071
    %vm1491 = vcmp.eq.f32.partialorder %v1490, 8.507059e+37
    %v1492 = vand.u32 %v1071, 2147483648
    %v1493 = vor.u32 1.1754944e-38, %v1492
    %v1494 = vsel %vm1491, %v1493, %v1489
    %v1495 = vmul.f32 1.0, %v1494
    %v1496 = vrcp.pop %v1072
    %v1497 = vmul.f32 %v1072, %v1496
    %v1498 = vsub.f32 1.0, %v1497
    %v1499 = vmul.f32 %v1496, %v1498
    %v1500 = vadd.f32 %v1496, %v1499
    %vm1501 = vweird.f32 %v1072
    %vm1502 = vweird.f32 %v1496
    %vm1503 = vmor %vm1501, %vm1502
    %v1504 = vsel %vm1503, %v1496, %v1500
    %v1505 = vand.u32 2147483647, %v1072
    %vm1506 = vcmp.eq.f32.partialorder %v1505, 8.507059e+37
    %v1507 = vand.u32 %v1072, 2147483648
    %v1508 = vor.u32 1.1754944e-38, %v1507
    %v1509 = vsel %vm1506, %v1508, %v1504
    %v1510 = vmul.f32 1.0, %v1509
    %v1511 = vrcp.pop %v1073
    %v1512 = vmul.f32 %v1073, %v1511
    %v1513 = vsub.f32 1.0, %v1512
    %v1514 = vmul.f32 %v1511, %v1513
    %v1515 = vadd.f32 %v1511, %v1514
    %vm1516 = vweird.f32 %v1073
    %vm1517 = vweird.f32 %v1511
    %vm1518 = vmor %vm1516, %vm1517
    %v1519 = vsel %vm1518, %v1511, %v1515
    %v1520 = vand.u32 2147483647, %v1073
    %vm1521 = vcmp.eq.f32.partialorder %v1520, 8.507059e+37
    %v1522 = vand.u32 %v1073, 2147483648
    %v1523 = vor.u32 1.1754944e-38, %v1522
    %v1524 = vsel %vm1521, %v1523, %v1519
    %v1525 = vmul.f32 1.0, %v1524
    %v1526 = vrcp.pop %v1074
    %v1527 = vmul.f32 %v1074, %v1526
    %v1528 = vsub.f32 1.0, %v1527
    %v1529 = vmul.f32 %v1526, %v1528
    %v1530 = vadd.f32 %v1526, %v1529
    %vm1531 = vweird.f32 %v1074
    %vm1532 = vweird.f32 %v1526
    %vm1533 = vmor %vm1531, %vm1532
    %v1534 = vsel %vm1533, %v1526, %v1530
    %v1535 = vand.u32 2147483647, %v1074
    %vm1536 = vcmp.eq.f32.partialorder %v1535, 8.507059e+37
    %v1537 = vand.u32 %v1074, 2147483648
    %v1538 = vor.u32 1.1754944e-38, %v1537
    %v1539 = vsel %vm1536, %v1538, %v1534
    %v1540 = vmul.f32 1.0, %v1539
    %v1541 = vrcp.pop %v1075
    %v1542 = vmul.f32 %v1075, %v1541
    %v1543 = vsub.f32 1.0, %v1542
    %v1544 = vmul.f32 %v1541, %v1543
    %v1545 = vadd.f32 %v1541, %v1544
    %vm1546 = vweird.f32 %v1075
    %vm1547 = vweird.f32 %v1541
    %vm1548 = vmor %vm1546, %vm1547
    %v1549 = vsel %vm1548, %v1541, %v1545
    %v1550 = vand.u32 2147483647, %v1075
    %vm1551 = vcmp.eq.f32.partialorder %v1550, 8.507059e+37
    %v1552 = vand.u32 %v1075, 2147483648
    %v1553 = vor.u32 1.1754944e-38, %v1552
    %v1554 = vsel %vm1551, %v1553, %v1549
    %v1555 = vmul.f32 1.0, %v1554
    %v1556 = vmul.f32 %v1090, %v700
    %v1557 = vmul.f32 %v1105, %v702
    %v1558 = vmul.f32 %v1120, %v705
    %v1559 = vmul.f32 %v1135, %v707
    %v1560 = vmul.f32 %v1150, %v710
    %v1561 = vmul.f32 %v1165, %v712
    %v1562 = vmul.f32 %v1180, %v715
    %v1563 = vmul.f32 %v1195, %v717
    %v1564 = vmul.f32 %v1210, %v720
    %v1565 = vmul.f32 %v1225, %v722
    %v1566 = vmul.f32 %v1240, %v725
    %v1567 = vmul.f32 %v1255, %v727
    %v1568 = vmul.f32 %v1270, %v730
    %v1569 = vmul.f32 %v1285, %v732
    %v1570 = vmul.f32 %v1300, %v735
    %v1571 = vmul.f32 %v1315, %v737
    %v1572 = vmul.f32 %v1330, %v740
    %v1573 = vmul.f32 %v1345, %v742
    %v1574 = vmul.f32 %v1360, %v745
    %v1575 = vmul.f32 %v1375, %v747
    %v1576 = vmul.f32 %v1390, %v750
    %v1577 = vmul.f32 %v1405, %v752
    %v1578 = vmul.f32 %v1420, %v755
    %v1579 = vmul.f32 %v1435, %v757
    %v1580 = vmul.f32 %v1450, %v760
    %v1581 = vmul.f32 %v1465, %v762
    %v1582 = vmul.f32 %v1480, %v765
    %v1583 = vmul.f32 %v1495, %v767
    %v1584 = vmul.f32 %v1510, %v770
    %v1585 = vmul.f32 %v1525, %v772
    %v1586 = vmul.f32 %v1540, %v775
    %v1587 = vmul.f32 %v1555, %v777
    %1588 = vst [vmem:[#allocation11] sm:$0xff] %v1556
    %1589 = vst [vmem:[#allocation11 + $0x8] sm:$0xff] %v1557
    %1590 = vst [vmem:[#allocation11 + $0x10] sm:$0xff] %v1558
    %1591 = vst [vmem:[#allocation11 + $0x18] sm:$0xff] %v1559
    %1592 = vst [vmem:[#allocation11 + $0x20] sm:$0xff] %v1560
    %1593 = vst [vmem:[#allocation11 + $0x28] sm:$0xff] %v1561
    %1594 = vst [vmem:[#allocation11 + $0x30] sm:$0xff] %v1562
    %1595 = vst [vmem:[#allocation11 + $0x38] sm:$0xff] %v1563
    %1596 = vst [vmem:[#allocation11 + $0x40] sm:$0xff] %v1564
    %1597 = vst [vmem:[#allocation11 + $0x48] sm:$0xff] %v1565
    %1598 = vst [vmem:[#allocation11 + $0x50] sm:$0xff] %v1566
    %1599 = vst [vmem:[#allocation11 + $0x58] sm:$0xff] %v1567
    %1600 = vst [vmem:[#allocation11 + $0x60] sm:$0xff] %v1568
    %1601 = vst [vmem:[#allocation11 + $0x68] sm:$0xff] %v1569
    %1602 = vst [vmem:[#allocation11 + $0x70] sm:$0xff] %v1570
    %1603 = vst [vmem:[#allocation11 + $0x78] sm:$0xff] %v1571
    %1604 = vst [vmem:[#allocation11 + $0x80] sm:$0xff] %v1572
    %1605 = vst [vmem:[#allocation11 + $0x88] sm:$0xff] %v1573
    %1606 = vst [vmem:[#allocation11 + $0x90] sm:$0xff] %v1574
    %1607 = vst [vmem:[#allocation11 + $0x98] sm:$0xff] %v1575
    %1608 = vst [vmem:[#allocation11 + $0xa0] sm:$0xff] %v1576
    %1609 = vst [vmem:[#allocation11 + $0xa8] sm:$0xff] %v1577
    %1610 = vst [vmem:[#allocation11 + $0xb0] sm:$0xff] %v1578
    %1611 = vst [vmem:[#allocation11 + $0xb8] sm:$0xff] %v1579
    %1612 = vst [vmem:[#allocation11 + $0xc0] sm:$0xff] %v1580
    %1613 = vst [vmem:[#allocation11 + $0xc8] sm:$0xff] %v1581
    %1614 = vst [vmem:[#allocation11 + $0xd0] sm:$0xff] %v1582
    %1615 = vst [vmem:[#allocation11 + $0xd8] sm:$0xff] %v1583
    %1616 = vst [vmem:[#allocation11 + $0xe0] sm:$0xff] %v1584
    %1617 = vst [vmem:[#allocation11 + $0xe8] sm:$0xff] %v1585
    %1618 = vst [vmem:[#allocation11 + $0xf0] sm:$0xff] %v1586
    %1619 = vst [vmem:[#allocation11 + $0xf8] sm:$0xff] %v1587
    // Predicated region
    $region50: #{tpu_custom_call.1} parent=1 // pred_check
      _
    $region51: #{tpu_custom_call.1} parent=1 // pred_check_branch
      %1621 = sbr.rel (0) target = $region53
    $region52: #{tpu_custom_call.1} parent=1 // pred_region
      %1623 = vsyncadd [#allocation4], 0
      %s1624 = sshll.u32 [#allocation11], 4
      %s1625 = int_to_ptr.vmem [resolvable:$true] %s1624
      %s1626 = sshll.u32 %s7, 4
      %s1627 = int_to_ptr.hbm [resolvable:$true] %s1626
      %1632 = dma.vmem_to_hbm [thread:$0]  %s1625, 4096, %s1627, [#allocation4], 128, 128, 8
    $region53: #{tpu_custom_call.1} parent=1 // pred_fallthru
      _
    // Predicated region
    $region54: #{tpu_custom_call.1} parent=1 // pred_check
      _
    $region55: #{tpu_custom_call.1} parent=1 // pred_check_branch
      %1634 = sbr.rel (0) target = $region57
    $region56: #{tpu_custom_call.1} parent=1 // pred_region
      %1636 = dma.done [#allocation4], 4096
    $region57: #{tpu_custom_call.1} parent=1 // pred_fallthru
      _
    %1637 = vsyncpa [#allocation3], 1
    %1638 = vsyncpa [#allocation6], 1
    %1639 = vsyncpa [#allocation9], 1
    %1640 = vsyncpa [#allocation4], 1

</llo_original>
